<compile_context>
chip_gen: v6e
topology: v6e:2x2x1
jax: 0.10.0
libtpu: 0.0.40
codegen_flags: <defaults>
</compile_context>

<pallas_src>
import jax
import jax.numpy as jnp
from jax.experimental import pallas as pl
from jax.experimental.pallas import tpu as pltpu


_SQRT_HALF = 0.7071067811865476


def _gelu(x):
    # Exact (erf-based) GELU, matching torch.nn.GELU() default.
    return 0.5 * x * (1.0 + jax.lax.erf(x * jnp.float32(_SQRT_HALF)))


def _conv_patches_pair(raw, act, H, W, not_left, not_right):
    """3x3 zero-padded im2col for a raw and an activated flat image at once.

    raw, act: (C, H*W), row-major flattening of (C, H, W) images.
    Returns (p_raw, p_act), each (9*C, H*W); row (dy*3+dx)*C + c of p_* holds
    img[c, y+dy-1, x+dx-1] (zero outside the image) at column y*W + x.

    Trick: zero-extend the flat image with W+1 zeros on both sides; tap
    (dy, dx) is then the static lane slice starting at dy*W + dx.  Only the
    column wrap-around at the left/right image border needs masking; the
    top/bottom padding rows land in the zero extensions automatically.  Raw
    and activated images are stacked along sublanes so every slice/mask is
    done once for both; gelu(0) == 0 keeps the shared zero padding valid for
    the activated path.
    """
    C, HW = raw.shape
    dtype = raw.dtype
    stacked = jnp.concatenate([raw, act], axis=0)              # (2C, HW)
    zpad = jnp.zeros((2 * C, W + 1), dtype)
    ext = jnp.concatenate([zpad, stacked, zpad], axis=1)       # (2C, HW+2W+2)

    raw_taps, act_taps = [], []
    for dy in range(3):
        for dx in range(3):
            start = dy * W + dx
            t = ext[:, start:start + HW]                       # (2C, HW)
            if dx == 0:
                t = t * not_left
            elif dx == 2:
                t = t * not_right
            raw_taps.append(t[:C])
            act_taps.append(t[C:])
    p_raw = jnp.concatenate(raw_taps, axis=0)                  # (9C, HW)
    p_act = jnp.concatenate(act_taps, axis=0)                  # (9C, HW)
    return p_raw, p_act


def _resblock(x_flat, H, W, not_left, not_right, w1, b1, w2, b2, ws, bs):
    """One ResBlock on a (Cin, H*W) flat image -> (Cout', H*W).

    w1: (Cout, 9*Cin)   conv1 (3x3), columns ordered (dy, dx, cin)
    w2: (Cout', Cout)   conv2 (1x1)
    ws: (Cout', 9*Cin)  conv_shortcut (3x3)
    b*: (Cout*, 1)
    Cout' may be < Cout when only leading output channels are consumed.
    """
    a_flat = _gelu(x_flat)                                     # act1, once/pixel
    p_raw, p_act = _conv_patches_pair(x_flat, a_flat, H, W, not_left, not_right)
    c1 = jnp.dot(w1, p_act, preferred_element_type=jnp.float32) + b1   # conv1
    sc = jnp.dot(ws, p_raw, preferred_element_type=jnp.float32) + bs   # shortcut
    h = _gelu(c1)                                              # act2
    h2 = jnp.dot(w2, h, preferred_element_type=jnp.float32) + b2       # conv2 1x1
    return h2 + sc


def _make_spnet_kernel(H, W):
    HW = H * W

    def kernel(x_ref,
               w1a_ref, b1a_ref, w2a_ref, b2a_ref, wsa_ref, bsa_ref,
               w1b_ref, b1b_ref, w2b_ref, b2b_ref, wsb_ref, bsb_ref,
               out_ref):
        # Border-column masks, built once and shared by both blocks.
        col = jax.lax.broadcasted_iota(jnp.int32, (1, HW), 1) % W
        not_left = (col != 0).astype(jnp.float32)       # kill x-coord == -1 wraps
        not_right = (col != W - 1).astype(jnp.float32)  # kill x-coord == W wraps

        x = x_ref[0].astype(jnp.float32)                       # (Cin_pad, H*W)
        y1 = _resblock(x, H, W, not_left, not_right,
                       w1a_ref[...], b1a_ref[...], w2a_ref[...],
                       b2a_ref[...], wsa_ref[...], bsa_ref[...])   # init_layer
        y2 = _resblock(y1, H, W, not_left, not_right,
                       w1b_ref[...], b1b_ref[...], w2b_ref[...],
                       b2b_ref[...], wsb_ref[...], bsb_ref[...])   # layer1[:3]
        out_ref[0] = y2.astype(out_ref.dtype)                  # (3, H*W) store
    return kernel


def _full_spec(arr):
    zeros = (0,) * arr.ndim
    return pl.BlockSpec(arr.shape, lambda n: zeros)


def _round_up(v, m):
    return -(-v // m) * m


def _pad_weight_cin(w_flat, cin, cin_pad):
    """Zero-pad the per-tap input-channel blocks of a (Cout, 9*cin) 3x3 weight
    (column order (dy, dx, cin)) up to cin_pad channels."""
    if cin == cin_pad:
        return w_flat
    cout = w_flat.shape[0]
    w = w_flat.reshape(cout, 9, cin)
    w = jnp.pad(w, ((0, 0), (0, 0), (0, cin_pad - cin)))
    return w.reshape(cout, 9 * cin_pad)


@jax.jit
def spnet_forward(x_nchw, params0, params1):
    """SPNet forward. x_nchw: (N, Cin, H, W) -> (N, 3, H, W)."""
    N, Cin, H, W = x_nchw.shape
    HW = H * W
    x_flat = x_nchw.reshape(N, Cin, HW)        # row-major flatten, lane-dense

    # Pad input channels to a multiple of 8 (sublane tile) so in-kernel
    # sublane concats/slices are aligned; padded channels are zero and the
    # matching weight columns are zero, so the math is unchanged.
    Cin_pad = _round_up(Cin, 8)
    if Cin_pad != Cin:
        x_flat = jnp.concatenate(
            [x_flat, jnp.zeros((N, Cin_pad - Cin, HW), x_flat.dtype)], axis=1)
    w1a = _pad_weight_cin(params0["w1"], Cin, Cin_pad)
    wsa = _pad_weight_cin(params0["ws"], Cin, Cin_pad)

    # Only channels 0..2 of layer1's output survive SPNet's final slice, so
    # shrink that block's 1x1 conv + shortcut conv to 3 output channels.
    w2b, b2b = params1["w2"][:3], params1["b2"][:3]
    wsb, bsb = params1["ws"][:3], params1["bs"][:3]

    args = (x_flat,
            w1a, params0["b1"], params0["w2"], params0["b2"],
            wsa, params0["bs"],
            params1["w1"], params1["b1"], w2b, b2b, wsb, bsb)

    out_flat = pl.pallas_call(
        _make_spnet_kernel(H, W),
        out_shape=jax.ShapeDtypeStruct((N, 3, HW), x_nchw.dtype),
        grid_spec=pltpu.PrefetchScalarGridSpec(
            num_scalar_prefetch=0,
            grid=(N,),
            in_specs=[pl.BlockSpec((1, Cin_pad, HW), lambda n: (n, 0, 0))]
                     + [_full_spec(a) for a in args[1:]],
            out_specs=pl.BlockSpec((1, 3, HW), lambda n: (n, 0, 0)),
        ),
        compiler_params=pltpu.CompilerParams(
            dimension_semantics=("parallel",)),
    )(*args)
    return out_flat.reshape(N, 3, H, W)


def init_resblock_params(key, in_ch, out_ch):
    """Deterministic synthetic ResBlock parameters in kernel-friendly layout.

    PyTorch layouts -> kernel layouts:
      conv1 / conv_shortcut weight (Cout, Cin, 3, 3) -> (Cout, 9*Cin) with
        columns ordered (dy, dx, cin)   [w.transpose(0, 2, 3, 1).reshape(...)]
      conv2 weight (Cout, Cout, 1, 1)                -> (Cout, Cout)
      biases (Cout,)                                 -> (Cout, 1)
    """
    k1, k2, k3, k4, k5, k6 = jax.random.split(key, 6)
    s = 0.05

    def conv3x3(k):
        w_t = jax.random.normal(k, (out_ch, in_ch, 3, 3), jnp.float32) * s
        return jnp.transpose(w_t, (0, 2, 3, 1)).reshape(out_ch, 9 * in_ch)

    return {
        "w1": conv3x3(k1),
        "b1": jax.random.normal(k2, (out_ch, 1), jnp.float32) * s,
        "w2": jax.random.normal(k3, (out_ch, out_ch), jnp.float32) * s,
        "b2": jax.random.normal(k4, (out_ch, 1), jnp.float32) * s,
        "ws": conv3x3(k5),
        "bs": jax.random.normal(k6, (out_ch, 1), jnp.float32) * s,
    }


# ----------------------------- pure-JAX reference ---------------------------
def _ref_conv3x3(x, w_flat, b):
    cout, cin = w_flat.shape[0], w_flat.shape[1] // 9
    w = jnp.transpose(w_flat.reshape(cout, 3, 3, cin), (0, 3, 1, 2))  # OIHW
    y = jax.lax.conv_general_dilated(
        x, w, window_strides=(1, 1), padding=((1, 1), (1, 1)),
        dimension_numbers=("NCHW", "OIHW", "NCHW"),
        precision=jax.lax.Precision.HIGHEST)
    return y + b.reshape(1, cout, 1, 1)


def _ref_resblock(x, p):
    h = _gelu(x)
    h = _ref_conv3x3(h, p["w1"], p["b1"])
    h = _gelu(h)
    h = jnp.einsum("oc,nchw->nohw", p["w2"], h,
                   precision=jax.lax.Precision.HIGHEST) \
        + p["b2"].reshape(1, -1, 1, 1)
    return h + _ref_conv3x3(x, p["ws"], p["bs"])


def spnet_reference(x, p0, p1):
    return _ref_resblock(_ref_resblock(x, p0), p1)[:, :3]


if __name__ == "__main__":
    key = jax.random.PRNGKey(0)
    k_x, k_p0, k_p1 = jax.random.split(key, 3)

    N, in_ch, H, W = 2, 4, 16, 16
    inner_ch = 32

    x = jax.random.normal(k_x, (N, in_ch, H, W), jnp.float32)
    params0 = init_resblock_params(k_p0, in_ch, inner_ch)
    params1 = init_resblock_params(k_p1, inner_ch, inner_ch)

    out = spnet_forward(x, params0, params1)
    jax.block_until_ready(out)
    assert out.shape == (N, 3, H, W), out.shape

    ref = spnet_reference(x, params0, params1)
    err = float(jnp.max(jnp.abs(out - ref)))
    assert err < 1e-2, f"max abs error vs reference: {err}"

    print("KERNEL_OK")
</pallas_src>

<mosaic_0001>
module attributes {stable_mosaic.version = 11 : i64} {
  func.func @kernel(%arg0: i32, %arg1: memref<1x8x256xf32, #tpu.memory_space<vmem>>, %arg2: memref<32x72xf32, #tpu.memory_space<vmem>>, %arg3: memref<32x1xf32, #tpu.memory_space<vmem>>, %arg4: memref<32x32xf32, #tpu.memory_space<vmem>>, %arg5: memref<32x1xf32, #tpu.memory_space<vmem>>, %arg6: memref<32x72xf32, #tpu.memory_space<vmem>>, %arg7: memref<32x1xf32, #tpu.memory_space<vmem>>, %arg8: memref<32x288xf32, #tpu.memory_space<vmem>>, %arg9: memref<32x1xf32, #tpu.memory_space<vmem>>, %arg10: memref<3x32xf32, #tpu.memory_space<vmem>>, %arg11: memref<3x1xf32, #tpu.memory_space<vmem>>, %arg12: memref<3x288xf32, #tpu.memory_space<vmem>>, %arg13: memref<3x1xf32, #tpu.memory_space<vmem>>, %arg14: memref<1x3x256xf32, #tpu.memory_space<vmem>>) attributes {dimension_semantics = [#tpu.dimension_semantics<parallel>], iteration_bounds = array<i64: 2>, scalar_prefetch = 0 : i64, scratch_operands = 0 : i64, tpu.core_type = #tpu.core_type<tc>, window_params = [{transform_indices = @transform_0, window_bounds = array<i64: 1, 8, 256>}, {pipeline_mode = #tpu.pipeline_mode<synchronous>, transform_indices = @transform_1, window_bounds = array<i64: 32, 72>}, {pipeline_mode = #tpu.pipeline_mode<synchronous>, transform_indices = @transform_2, window_bounds = array<i64: 32, 1>}, {pipeline_mode = #tpu.pipeline_mode<synchronous>, transform_indices = @transform_3, window_bounds = array<i64: 32, 32>}, {pipeline_mode = #tpu.pipeline_mode<synchronous>, transform_indices = @transform_4, window_bounds = array<i64: 32, 1>}, {pipeline_mode = #tpu.pipeline_mode<synchronous>, transform_indices = @transform_5, window_bounds = array<i64: 32, 72>}, {pipeline_mode = #tpu.pipeline_mode<synchronous>, transform_indices = @transform_6, window_bounds = array<i64: 32, 1>}, {pipeline_mode = #tpu.pipeline_mode<synchronous>, transform_indices = @transform_7, window_bounds = array<i64: 32, 288>}, {pipeline_mode = #tpu.pipeline_mode<synchronous>, transform_indices = @transform_8, window_bounds = array<i64: 32, 1>}, {pipeline_mode = #tpu.pipeline_mode<synchronous>, transform_indices = @transform_9, window_bounds = array<i64: 3, 32>}, {pipeline_mode = #tpu.pipeline_mode<synchronous>, transform_indices = @transform_10, window_bounds = array<i64: 3, 1>}, {pipeline_mode = #tpu.pipeline_mode<synchronous>, transform_indices = @transform_11, window_bounds = array<i64: 3, 288>}, {pipeline_mode = #tpu.pipeline_mode<synchronous>, transform_indices = @transform_12, window_bounds = array<i64: 3, 1>}, {transform_indices = @transform_13, window_bounds = array<i64: 1, 3, 256>}]} {
    %0 = tpu.iota {dimensions = array<i32: 1>} : vector<1x256xi32>
    %c16_i32 = arith.constant 16 : i32
    %c0_i32 = arith.constant 0 : i32
    %1 = arith.cmpi eq, %c16_i32, %c0_i32 : i32
    %c1_i32 = arith.constant 1 : i32
    %2 = arith.select %1, %c1_i32, %c16_i32 : i32
    %3 = vector.broadcast %2 : i32 to vector<1x256xi32>
    %4 = arith.remsi %0, %3 : vector<1x256xi32>
    %c0_i32_0 = arith.constant 0 : i32
    %5 = vector.broadcast %c0_i32_0 : i32 to vector<1x256xi32>
    %6 = arith.cmpi ne, %4, %5 : vector<1x256xi32>
    %c0_i32_1 = arith.constant 0 : i32
    %7 = vector.broadcast %c0_i32_1 : i32 to vector<1x256xi32>
    %8 = arith.cmpi slt, %4, %7 : vector<1x256xi32>
    %c0_i32_2 = arith.constant 0 : i32
    %9 = arith.cmpi slt, %2, %c0_i32_2 : i32
    %10 = vector.broadcast %9 : i1 to vector<1x256xi1>
    %11 = vector.broadcast %10 : vector<1x256xi1> to vector<1x256xi1>
    %12 = arith.xori %8, %11 : vector<1x256xi1>
    %13 = arith.andi %12, %6 : vector<1x256xi1>
    %14 = vector.broadcast %2 : i32 to vector<1x256xi32>
    %15 = arith.addi %4, %14 : vector<1x256xi32>
    %16 = arith.select %13, %15, %4 : vector<1x256xi1>, vector<1x256xi32>
    %c0_i32_3 = arith.constant 0 : i32
    %17 = vector.broadcast %c0_i32_3 : i32 to vector<1x256xi32>
    %18 = arith.cmpi ne, %16, %17 : vector<1x256xi32>
    %19 = arith.extui %18 : vector<1x256xi1> to vector<1x256xi32>
    %20 = arith.sitofp %19 : vector<1x256xi32> to vector<1x256xf32>
    %c15_i32 = arith.constant 15 : i32
    %21 = vector.broadcast %c15_i32 : i32 to vector<1x256xi32>
    %22 = arith.cmpi ne, %16, %21 : vector<1x256xi32>
    %23 = arith.extui %22 : vector<1x256xi1> to vector<1x256xi32>
    %24 = arith.sitofp %23 : vector<1x256xi32> to vector<1x256xf32>
    %c0 = arith.constant 0 : index
    %c0_4 = arith.constant 0 : index
    %c0_5 = arith.constant 0 : index
    %25 = vector.load %arg1[%c0, %c0_4, %c0_5] : memref<1x8x256xf32, #tpu.memory_space<vmem>>, vector<1x8x256xf32>
    %26 = vector.shape_cast %25 : vector<1x8x256xf32> to vector<8x256xf32>
    %c0_6 = arith.constant 0 : index
    %c0_7 = arith.constant 0 : index
    %27 = vector.load %arg2[%c0_6, %c0_7] : memref<32x72xf32, #tpu.memory_space<vmem>>, vector<32x72xf32>
    %c0_8 = arith.constant 0 : index
    %c0_9 = arith.constant 0 : index
    %28 = vector.load %arg3[%c0_8, %c0_9] : memref<32x1xf32, #tpu.memory_space<vmem>>, vector<32x1xf32>
    %c0_10 = arith.constant 0 : index
    %c0_11 = arith.constant 0 : index
    %29 = vector.load %arg4[%c0_10, %c0_11] : memref<32x32xf32, #tpu.memory_space<vmem>>, vector<32x32xf32>
    %c0_12 = arith.constant 0 : index
    %c0_13 = arith.constant 0 : index
    %30 = vector.load %arg5[%c0_12, %c0_13] : memref<32x1xf32, #tpu.memory_space<vmem>>, vector<32x1xf32>
    %c0_14 = arith.constant 0 : index
    %c0_15 = arith.constant 0 : index
    %31 = vector.load %arg6[%c0_14, %c0_15] : memref<32x72xf32, #tpu.memory_space<vmem>>, vector<32x72xf32>
    %c0_16 = arith.constant 0 : index
    %c0_17 = arith.constant 0 : index
    %32 = vector.load %arg7[%c0_16, %c0_17] : memref<32x1xf32, #tpu.memory_space<vmem>>, vector<32x1xf32>
    %cst = arith.constant 5.000000e-01 : f32
    %33 = vector.broadcast %cst : f32 to vector<8x256xf32>
    %34 = arith.mulf %33, %26 : vector<8x256xf32>
    %cst_18 = arith.constant 0.707106769 : f32
    %35 = vector.broadcast %cst_18 : f32 to vector<8x256xf32>
    %36 = arith.mulf %26, %35 : vector<8x256xf32>
    %37 = math.erf %36 : vector<8x256xf32>
    %cst_19 = arith.constant 1.000000e+00 : f32
    %38 = vector.broadcast %cst_19 : f32 to vector<8x256xf32>
    %39 = arith.addf %38, %37 : vector<8x256xf32>
    %40 = arith.mulf %34, %39 : vector<8x256xf32>
    %41 = tpu.concatenate %26, %40 in 0 : vector<8x256xf32>, vector<8x256xf32> -> vector<16x256xf32>
    %cst_20 = arith.constant 0.000000e+00 : f32
    %42 = vector.broadcast %cst_20 : f32 to vector<16x17xf32>
    %43 = tpu.concatenate %42, %41, %42 in 1 : vector<16x17xf32>, vector<16x256xf32>, vector<16x17xf32> -> vector<16x290xf32>
    %44 = vector.extract_strided_slice %43 {offsets = [0, 0], sizes = [16, 256], strides = [1, 1]} : vector<16x290xf32> to vector<16x256xf32>
    %45 = vector.broadcast %20 : vector<1x256xf32> to vector<16x256xf32>
    %46 = arith.mulf %44, %45 : vector<16x256xf32>
    %47 = vector.extract_strided_slice %46 {offsets = [0, 0], sizes = [8, 256], strides = [1, 1]} : vector<16x256xf32> to vector<8x256xf32>
    %48 = vector.extract_strided_slice %46 {offsets = [8, 0], sizes = [8, 256], strides = [1, 1]} : vector<16x256xf32> to vector<8x256xf32>
    %49 = vector.extract_strided_slice %43 {offsets = [0, 1], sizes = [16, 256], strides = [1, 1]} : vector<16x290xf32> to vector<16x256xf32>
    %50 = vector.extract_strided_slice %49 {offsets = [0, 0], sizes = [8, 256], strides = [1, 1]} : vector<16x256xf32> to vector<8x256xf32>
    %51 = vector.extract_strided_slice %49 {offsets = [8, 0], sizes = [8, 256], strides = [1, 1]} : vector<16x256xf32> to vector<8x256xf32>
    %52 = vector.extract_strided_slice %43 {offsets = [0, 2], sizes = [16, 256], strides = [1, 1]} : vector<16x290xf32> to vector<16x256xf32>
    %53 = vector.broadcast %24 : vector<1x256xf32> to vector<16x256xf32>
    %54 = arith.mulf %52, %53 : vector<16x256xf32>
    %55 = vector.extract_strided_slice %54 {offsets = [0, 0], sizes = [8, 256], strides = [1, 1]} : vector<16x256xf32> to vector<8x256xf32>
    %56 = vector.extract_strided_slice %54 {offsets = [8, 0], sizes = [8, 256], strides = [1, 1]} : vector<16x256xf32> to vector<8x256xf32>
    %57 = vector.extract_strided_slice %43 {offsets = [0, 16], sizes = [16, 256], strides = [1, 1]} : vector<16x290xf32> to vector<16x256xf32>
    %58 = vector.broadcast %20 : vector<1x256xf32> to vector<16x256xf32>
    %59 = arith.mulf %57, %58 : vector<16x256xf32>
    %60 = vector.extract_strided_slice %59 {offsets = [0, 0], sizes = [8, 256], strides = [1, 1]} : vector<16x256xf32> to vector<8x256xf32>
    %61 = vector.extract_strided_slice %59 {offsets = [8, 0], sizes = [8, 256], strides = [1, 1]} : vector<16x256xf32> to vector<8x256xf32>
    %62 = vector.extract_strided_slice %43 {offsets = [0, 17], sizes = [16, 256], strides = [1, 1]} : vector<16x290xf32> to vector<16x256xf32>
    %63 = vector.extract_strided_slice %62 {offsets = [0, 0], sizes = [8, 256], strides = [1, 1]} : vector<16x256xf32> to vector<8x256xf32>
    %64 = vector.extract_strided_slice %62 {offsets = [8, 0], sizes = [8, 256], strides = [1, 1]} : vector<16x256xf32> to vector<8x256xf32>
    %65 = vector.extract_strided_slice %43 {offsets = [0, 18], sizes = [16, 256], strides = [1, 1]} : vector<16x290xf32> to vector<16x256xf32>
    %66 = vector.broadcast %24 : vector<1x256xf32> to vector<16x256xf32>
    %67 = arith.mulf %65, %66 : vector<16x256xf32>
    %68 = vector.extract_strided_slice %67 {offsets = [0, 0], sizes = [8, 256], strides = [1, 1]} : vector<16x256xf32> to vector<8x256xf32>
    %69 = vector.extract_strided_slice %67 {offsets = [8, 0], sizes = [8, 256], strides = [1, 1]} : vector<16x256xf32> to vector<8x256xf32>
    %70 = vector.extract_strided_slice %43 {offsets = [0, 32], sizes = [16, 256], strides = [1, 1]} : vector<16x290xf32> to vector<16x256xf32>
    %71 = vector.broadcast %20 : vector<1x256xf32> to vector<16x256xf32>
    %72 = arith.mulf %70, %71 : vector<16x256xf32>
    %73 = vector.extract_strided_slice %72 {offsets = [0, 0], sizes = [8, 256], strides = [1, 1]} : vector<16x256xf32> to vector<8x256xf32>
    %74 = vector.extract_strided_slice %72 {offsets = [8, 0], sizes = [8, 256], strides = [1, 1]} : vector<16x256xf32> to vector<8x256xf32>
    %75 = vector.extract_strided_slice %43 {offsets = [0, 33], sizes = [16, 256], strides = [1, 1]} : vector<16x290xf32> to vector<16x256xf32>
    %76 = vector.extract_strided_slice %75 {offsets = [0, 0], sizes = [8, 256], strides = [1, 1]} : vector<16x256xf32> to vector<8x256xf32>
    %77 = vector.extract_strided_slice %75 {offsets = [8, 0], sizes = [8, 256], strides = [1, 1]} : vector<16x256xf32> to vector<8x256xf32>
    %78 = vector.extract_strided_slice %43 {offsets = [0, 34], sizes = [16, 256], strides = [1, 1]} : vector<16x290xf32> to vector<16x256xf32>
    %79 = vector.broadcast %24 : vector<1x256xf32> to vector<16x256xf32>
    %80 = arith.mulf %78, %79 : vector<16x256xf32>
    %81 = vector.extract_strided_slice %80 {offsets = [0, 0], sizes = [8, 256], strides = [1, 1]} : vector<16x256xf32> to vector<8x256xf32>
    %82 = vector.extract_strided_slice %80 {offsets = [8, 0], sizes = [8, 256], strides = [1, 1]} : vector<16x256xf32> to vector<8x256xf32>
    %83 = tpu.concatenate %47, %50, %55, %60, %63, %68, %73, %76, %81 in 0 : vector<8x256xf32>, vector<8x256xf32>, vector<8x256xf32>, vector<8x256xf32>, vector<8x256xf32>, vector<8x256xf32>, vector<8x256xf32>, vector<8x256xf32>, vector<8x256xf32> -> vector<72x256xf32>
    %84 = tpu.concatenate %48, %51, %56, %61, %64, %69, %74, %77, %82 in 0 : vector<8x256xf32>, vector<8x256xf32>, vector<8x256xf32>, vector<8x256xf32>, vector<8x256xf32>, vector<8x256xf32>, vector<8x256xf32>, vector<8x256xf32>, vector<8x256xf32> -> vector<72x256xf32>
    %cst_21 = arith.constant dense<0.000000e+00> : vector<32x256xf32>
    %85 = tpu.matmul %27, %84, %cst_21 {dimension_numbers = #tpu.dot_dimension_numbers<[1], [0], [0], [1], [0, 0, 1, 1], [], []>} : vector<32x72xf32>, vector<72x256xf32>, vector<32x256xf32> -> vector<32x256xf32>
    %86 = vector.broadcast %28 : vector<32x1xf32> to vector<32x256xf32>
    %87 = arith.addf %85, %86 : vector<32x256xf32>
    %cst_22 = arith.constant dense<0.000000e+00> : vector<32x256xf32>
    %88 = tpu.matmul %31, %83, %cst_22 {dimension_numbers = #tpu.dot_dimension_numbers<[1], [0], [0], [1], [0, 0, 1, 1], [], []>} : vector<32x72xf32>, vector<72x256xf32>, vector<32x256xf32> -> vector<32x256xf32>
    %89 = vector.broadcast %32 : vector<32x1xf32> to vector<32x256xf32>
    %90 = arith.addf %88, %89 : vector<32x256xf32>
    %cst_23 = arith.constant 5.000000e-01 : f32
    %91 = vector.broadcast %cst_23 : f32 to vector<32x256xf32>
    %92 = arith.mulf %91, %87 : vector<32x256xf32>
    %cst_24 = arith.constant 0.707106769 : f32
    %93 = vector.broadcast %cst_24 : f32 to vector<32x256xf32>
    %94 = arith.mulf %87, %93 : vector<32x256xf32>
    %95 = math.erf %94 : vector<32x256xf32>
    %cst_25 = arith.constant 1.000000e+00 : f32
    %96 = vector.broadcast %cst_25 : f32 to vector<32x256xf32>
    %97 = arith.addf %96, %95 : vector<32x256xf32>
    %98 = arith.mulf %92, %97 : vector<32x256xf32>
    %cst_26 = arith.constant dense<0.000000e+00> : vector<32x256xf32>
    %99 = tpu.matmul %29, %98, %cst_26 {dimension_numbers = #tpu.dot_dimension_numbers<[1], [0], [0], [1], [0, 0, 1, 1], [], []>} : vector<32x32xf32>, vector<32x256xf32>, vector<32x256xf32> -> vector<32x256xf32>
    %100 = vector.broadcast %30 : vector<32x1xf32> to vector<32x256xf32>
    %101 = arith.addf %99, %100 : vector<32x256xf32>
    %102 = arith.addf %101, %90 : vector<32x256xf32>
    %c0_27 = arith.constant 0 : index
    %c0_28 = arith.constant 0 : index
    %103 = vector.load %arg8[%c0_27, %c0_28] : memref<32x288xf32, #tpu.memory_space<vmem>>, vector<32x288xf32>
    %c0_29 = arith.constant 0 : index
    %c0_30 = arith.constant 0 : index
    %104 = vector.load %arg9[%c0_29, %c0_30] : memref<32x1xf32, #tpu.memory_space<vmem>>, vector<32x1xf32>
    %c0_31 = arith.constant 0 : index
    %c0_32 = arith.constant 0 : index
    %105 = vector.load %arg10[%c0_31, %c0_32] : memref<3x32xf32, #tpu.memory_space<vmem>>, vector<3x32xf32>
    %c0_33 = arith.constant 0 : index
    %c0_34 = arith.constant 0 : index
    %106 = vector.load %arg11[%c0_33, %c0_34] : memref<3x1xf32, #tpu.memory_space<vmem>>, vector<3x1xf32>
    %c0_35 = arith.constant 0 : index
    %c0_36 = arith.constant 0 : index
    %107 = vector.load %arg12[%c0_35, %c0_36] : memref<3x288xf32, #tpu.memory_space<vmem>>, vector<3x288xf32>
    %c0_37 = arith.constant 0 : index
    %c0_38 = arith.constant 0 : index
    %108 = vector.load %arg13[%c0_37, %c0_38] : memref<3x1xf32, #tpu.memory_space<vmem>>, vector<3x1xf32>
    %cst_39 = arith.constant 5.000000e-01 : f32
    %109 = vector.broadcast %cst_39 : f32 to vector<32x256xf32>
    %110 = arith.mulf %109, %102 : vector<32x256xf32>
    %cst_40 = arith.constant 0.707106769 : f32
    %111 = vector.broadcast %cst_40 : f32 to vector<32x256xf32>
    %112 = arith.mulf %102, %111 : vector<32x256xf32>
    %113 = math.erf %112 : vector<32x256xf32>
    %cst_41 = arith.constant 1.000000e+00 : f32
    %114 = vector.broadcast %cst_41 : f32 to vector<32x256xf32>
    %115 = arith.addf %114, %113 : vector<32x256xf32>
    %116 = arith.mulf %110, %115 : vector<32x256xf32>
    %117 = tpu.concatenate %102, %116 in 0 : vector<32x256xf32>, vector<32x256xf32> -> vector<64x256xf32>
    %cst_42 = arith.constant 0.000000e+00 : f32
    %118 = vector.broadcast %cst_42 : f32 to vector<64x17xf32>
    %119 = tpu.concatenate %118, %117, %118 in 1 : vector<64x17xf32>, vector<64x256xf32>, vector<64x17xf32> -> vector<64x290xf32>
    %120 = vector.extract_strided_slice %119 {offsets = [0, 0], sizes = [64, 256], strides = [1, 1]} : vector<64x290xf32> to vector<64x256xf32>
    %121 = vector.broadcast %20 : vector<1x256xf32> to vector<64x256xf32>
    %122 = arith.mulf %120, %121 : vector<64x256xf32>
    %123 = vector.extract_strided_slice %122 {offsets = [0, 0], sizes = [32, 256], strides = [1, 1]} : vector<64x256xf32> to vector<32x256xf32>
    %124 = vector.extract_strided_slice %122 {offsets = [32, 0], sizes = [32, 256], strides = [1, 1]} : vector<64x256xf32> to vector<32x256xf32>
    %125 = vector.extract_strided_slice %119 {offsets = [0, 1], sizes = [64, 256], strides = [1, 1]} : vector<64x290xf32> to vector<64x256xf32>
    %126 = vector.extract_strided_slice %125 {offsets = [0, 0], sizes = [32, 256], strides = [1, 1]} : vector<64x256xf32> to vector<32x256xf32>
    %127 = vector.extract_strided_slice %125 {offsets = [32, 0], sizes = [32, 256], strides = [1, 1]} : vector<64x256xf32> to vector<32x256xf32>
    %128 = vector.extract_strided_slice %119 {offsets = [0, 2], sizes = [64, 256], strides = [1, 1]} : vector<64x290xf32> to vector<64x256xf32>
    %129 = vector.broadcast %24 : vector<1x256xf32> to vector<64x256xf32>
    %130 = arith.mulf %128, %129 : vector<64x256xf32>
    %131 = vector.extract_strided_slice %130 {offsets = [0, 0], sizes = [32, 256], strides = [1, 1]} : vector<64x256xf32> to vector<32x256xf32>
    %132 = vector.extract_strided_slice %130 {offsets = [32, 0], sizes = [32, 256], strides = [1, 1]} : vector<64x256xf32> to vector<32x256xf32>
    %133 = vector.extract_strided_slice %119 {offsets = [0, 16], sizes = [64, 256], strides = [1, 1]} : vector<64x290xf32> to vector<64x256xf32>
    %134 = vector.broadcast %20 : vector<1x256xf32> to vector<64x256xf32>
    %135 = arith.mulf %133, %134 : vector<64x256xf32>
    %136 = vector.extract_strided_slice %135 {offsets = [0, 0], sizes = [32, 256], strides = [1, 1]} : vector<64x256xf32> to vector<32x256xf32>
    %137 = vector.extract_strided_slice %135 {offsets = [32, 0], sizes = [32, 256], strides = [1, 1]} : vector<64x256xf32> to vector<32x256xf32>
    %138 = vector.extract_strided_slice %119 {offsets = [0, 17], sizes = [64, 256], strides = [1, 1]} : vector<64x290xf32> to vector<64x256xf32>
    %139 = vector.extract_strided_slice %138 {offsets = [0, 0], sizes = [32, 256], strides = [1, 1]} : vector<64x256xf32> to vector<32x256xf32>
    %140 = vector.extract_strided_slice %138 {offsets = [32, 0], sizes = [32, 256], strides = [1, 1]} : vector<64x256xf32> to vector<32x256xf32>
    %141 = vector.extract_strided_slice %119 {offsets = [0, 18], sizes = [64, 256], strides = [1, 1]} : vector<64x290xf32> to vector<64x256xf32>
    %142 = vector.broadcast %24 : vector<1x256xf32> to vector<64x256xf32>
    %143 = arith.mulf %141, %142 : vector<64x256xf32>
    %144 = vector.extract_strided_slice %143 {offsets = [0, 0], sizes = [32, 256], strides = [1, 1]} : vector<64x256xf32> to vector<32x256xf32>
    %145 = vector.extract_strided_slice %143 {offsets = [32, 0], sizes = [32, 256], strides = [1, 1]} : vector<64x256xf32> to vector<32x256xf32>
    %146 = vector.extract_strided_slice %119 {offsets = [0, 32], sizes = [64, 256], strides = [1, 1]} : vector<64x290xf32> to vector<64x256xf32>
    %147 = vector.broadcast %20 : vector<1x256xf32> to vector<64x256xf32>
    %148 = arith.mulf %146, %147 : vector<64x256xf32>
    %149 = vector.extract_strided_slice %148 {offsets = [0, 0], sizes = [32, 256], strides = [1, 1]} : vector<64x256xf32> to vector<32x256xf32>
    %150 = vector.extract_strided_slice %148 {offsets = [32, 0], sizes = [32, 256], strides = [1, 1]} : vector<64x256xf32> to vector<32x256xf32>
    %151 = vector.extract_strided_slice %119 {offsets = [0, 33], sizes = [64, 256], strides = [1, 1]} : vector<64x290xf32> to vector<64x256xf32>
    %152 = vector.extract_strided_slice %151 {offsets = [0, 0], sizes = [32, 256], strides = [1, 1]} : vector<64x256xf32> to vector<32x256xf32>
    %153 = vector.extract_strided_slice %151 {offsets = [32, 0], sizes = [32, 256], strides = [1, 1]} : vector<64x256xf32> to vector<32x256xf32>
    %154 = vector.extract_strided_slice %119 {offsets = [0, 34], sizes = [64, 256], strides = [1, 1]} : vector<64x290xf32> to vector<64x256xf32>
    %155 = vector.broadcast %24 : vector<1x256xf32> to vector<64x256xf32>
    %156 = arith.mulf %154, %155 : vector<64x256xf32>
    %157 = vector.extract_strided_slice %156 {offsets = [0, 0], sizes = [32, 256], strides = [1, 1]} : vector<64x256xf32> to vector<32x256xf32>
    %158 = vector.extract_strided_slice %156 {offsets = [32, 0], sizes = [32, 256], strides = [1, 1]} : vector<64x256xf32> to vector<32x256xf32>
    %159 = tpu.concatenate %123, %126, %131, %136, %139, %144, %149, %152, %157 in 0 : vector<32x256xf32>, vector<32x256xf32>, vector<32x256xf32>, vector<32x256xf32>, vector<32x256xf32>, vector<32x256xf32>, vector<32x256xf32>, vector<32x256xf32>, vector<32x256xf32> -> vector<288x256xf32>
    %160 = tpu.concatenate %124, %127, %132, %137, %140, %145, %150, %153, %158 in 0 : vector<32x256xf32>, vector<32x256xf32>, vector<32x256xf32>, vector<32x256xf32>, vector<32x256xf32>, vector<32x256xf32>, vector<32x256xf32>, vector<32x256xf32>, vector<32x256xf32> -> vector<288x256xf32>
    %cst_43 = arith.constant dense<0.000000e+00> : vector<32x256xf32>
    %161 = tpu.matmul %103, %160, %cst_43 {dimension_numbers = #tpu.dot_dimension_numbers<[1], [0], [0], [1], [0, 0, 1, 1], [], []>} : vector<32x288xf32>, vector<288x256xf32>, vector<32x256xf32> -> vector<32x256xf32>
    %162 = vector.broadcast %104 : vector<32x1xf32> to vector<32x256xf32>
    %163 = arith.addf %161, %162 : vector<32x256xf32>
    %cst_44 = arith.constant dense<0.000000e+00> : vector<3x256xf32>
    %164 = tpu.matmul %107, %159, %cst_44 {dimension_numbers = #tpu.dot_dimension_numbers<[1], [0], [0], [1], [0, 0, 1, 1], [], []>} : vector<3x288xf32>, vector<288x256xf32>, vector<3x256xf32> -> vector<3x256xf32>
    %165 = vector.broadcast %108 : vector<3x1xf32> to vector<3x256xf32>
    %166 = arith.addf %164, %165 : vector<3x256xf32>
    %cst_45 = arith.constant 5.000000e-01 : f32
    %167 = vector.broadcast %cst_45 : f32 to vector<32x256xf32>
    %168 = arith.mulf %167, %163 : vector<32x256xf32>
    %cst_46 = arith.constant 0.707106769 : f32
    %169 = vector.broadcast %cst_46 : f32 to vector<32x256xf32>
    %170 = arith.mulf %163, %169 : vector<32x256xf32>
    %171 = math.erf %170 : vector<32x256xf32>
    %cst_47 = arith.constant 1.000000e+00 : f32
    %172 = vector.broadcast %cst_47 : f32 to vector<32x256xf32>
    %173 = arith.addf %172, %171 : vector<32x256xf32>
    %174 = arith.mulf %168, %173 : vector<32x256xf32>
    %cst_48 = arith.constant dense<0.000000e+00> : vector<3x256xf32>
    %175 = tpu.matmul %105, %174, %cst_48 {dimension_numbers = #tpu.dot_dimension_numbers<[1], [0], [0], [1], [0, 0, 1, 1], [], []>} : vector<3x32xf32>, vector<32x256xf32>, vector<3x256xf32> -> vector<3x256xf32>
    %176 = vector.broadcast %106 : vector<3x1xf32> to vector<3x256xf32>
    %177 = arith.addf %175, %176 : vector<3x256xf32>
    %178 = arith.addf %177, %166 : vector<3x256xf32>
    %c0_49 = arith.constant 0 : index
    %c0_50 = arith.constant 0 : index
    %c0_51 = arith.constant 0 : index
    %179 = vector.load %arg14[%c0_49, %c0_50, %c0_51] : memref<1x3x256xf32, #tpu.memory_space<vmem>>, vector<1x3x256xf32>
    %180 = vector.shape_cast %179 : vector<1x3x256xf32> to vector<3x256xf32>
    %181 = vector.shape_cast %178 : vector<3x256xf32> to vector<1x3x256xf32>
    tpu.vector_store %arg14[%c0_49, %c0_50, %c0_51], %181 {strides = array<i32>} : memref<1x3x256xf32, #tpu.memory_space<vmem>>, vector<1x3x256xf32>,
    return
  }
  func.func @transform_0(%arg0: i32) -> (i32, i32, i32) {
    %c0_i32 = arith.constant 0 : i32
    %c0_i32_0 = arith.constant 0 : i32
    %c0_i32_1 = arith.constant 0 : i32
    return %arg0, %c0_i32, %c0_i32_0 : i32, i32, i32
  }
  func.func @transform_1(%arg0: i32) -> (i32, i32) {
    %c0_i32 = arith.constant 0 : i32
    %c0_i32_0 = arith.constant 0 : i32
    %c0_i32_1 = arith.constant 0 : i32
    return %c0_i32, %c0_i32_0 : i32, i32
  }
  func.func @transform_2(%arg0: i32) -> (i32, i32) {
    %c0_i32 = arith.constant 0 : i32
    %c0_i32_0 = arith.constant 0 : i32
    %c0_i32_1 = arith.constant 0 : i32
    return %c0_i32, %c0_i32_0 : i32, i32
  }
  func.func @transform_3(%arg0: i32) -> (i32, i32) {
    %c0_i32 = arith.constant 0 : i32
    %c0_i32_0 = arith.constant 0 : i32
    %c0_i32_1 = arith.constant 0 : i32
    return %c0_i32, %c0_i32_0 : i32, i32
  }
  func.func @transform_4(%arg0: i32) -> (i32, i32) {
    %c0_i32 = arith.constant 0 : i32
    %c0_i32_0 = arith.constant 0 : i32
    %c0_i32_1 = arith.constant 0 : i32
    return %c0_i32, %c0_i32_0 : i32, i32
  }
  func.func @transform_5(%arg0: i32) -> (i32, i32) {
    %c0_i32 = arith.constant 0 : i32
    %c0_i32_0 = arith.constant 0 : i32
    %c0_i32_1 = arith.constant 0 : i32
    return %c0_i32, %c0_i32_0 : i32, i32
  }
  func.func @transform_6(%arg0: i32) -> (i32, i32) {
    %c0_i32 = arith.constant 0 : i32
    %c0_i32_0 = arith.constant 0 : i32
    %c0_i32_1 = arith.constant 0 : i32
    return %c0_i32, %c0_i32_0 : i32, i32
  }
  func.func @transform_7(%arg0: i32) -> (i32, i32) {
    %c0_i32 = arith.constant 0 : i32
    %c0_i32_0 = arith.constant 0 : i32
    %c0_i32_1 = arith.constant 0 : i32
    return %c0_i32, %c0_i32_0 : i32, i32
  }
  func.func @transform_8(%arg0: i32) -> (i32, i32) {
    %c0_i32 = arith.constant 0 : i32
    %c0_i32_0 = arith.constant 0 : i32
    %c0_i32_1 = arith.constant 0 : i32
    return %c0_i32, %c0_i32_0 : i32, i32
  }
  func.func @transform_9(%arg0: i32) -> (i32, i32) {
    %c0_i32 = arith.constant 0 : i32
    %c0_i32_0 = arith.constant 0 : i32
    %c0_i32_1 = arith.constant 0 : i32
    return %c0_i32, %c0_i32_0 : i32, i32
  }
  func.func @transform_10(%arg0: i32) -> (i32, i32) {
    %c0_i32 = arith.constant 0 : i32
    %c0_i32_0 = arith.constant 0 : i32
    %c0_i32_1 = arith.constant 0 : i32
    return %c0_i32, %c0_i32_0 : i32, i32
  }
  func.func @transform_11(%arg0: i32) -> (i32, i32) {
    %c0_i32 = arith.constant 0 : i32
    %c0_i32_0 = arith.constant 0 : i32
    %c0_i32_1 = arith.constant 0 : i32
    return %c0_i32, %c0_i32_0 : i32, i32
  }
  func.func @transform_12(%arg0: i32) -> (i32, i32) {
    %c0_i32 = arith.constant 0 : i32
    %c0_i32_0 = arith.constant 0 : i32
    %c0_i32_1 = arith.constant 0 : i32
    return %c0_i32, %c0_i32_0 : i32, i32
  }
  func.func @transform_13(%arg0: i32) -> (i32, i32, i32) {
    %c0_i32 = arith.constant 0 : i32
    %c0_i32_0 = arith.constant 0 : i32
    %c0_i32_1 = arith.constant 0 : i32
    return %arg0, %c0_i32, %c0_i32_0 : i32, i32, i32
  }
}

</mosaic_0001>

<llo_original>
// kernel: spnet_forward.1
$region0: #{spnet_forward.1}
  #allocation0 [shape = 'u32[]', space=smem, size = 0x4, offset = 0x4, fixed_abs, tag = 'smem constant byte address 0x4 - core index']
  #allocation1 [shape = 'u32[144,128]{1,0:T(1,128)}', space=vmem, size = 0x12000, scoped, tag = 'internal scratch']
  %s0 = inlined_call_operand.vmem [shape: f32[2,8,256], index: 0, kind: input, shape index: {}]
  %s1 = inlined_call_operand.vmem [shape: f32[32,72], index: 1, kind: input, shape index: {}]
  %s2 = inlined_call_operand.vmem [shape: f32[32,1], index: 2, kind: input, shape index: {}]
  %s3 = inlined_call_operand.vmem [shape: f32[32,32], index: 3, kind: input, shape index: {}]
  %s4 = inlined_call_operand.vmem [shape: f32[32,1], index: 4, kind: input, shape index: {}]
  %s5 = inlined_call_operand.vmem [shape: f32[32,72], index: 5, kind: input, shape index: {}]
  %s6 = inlined_call_operand.vmem [shape: f32[32,1], index: 6, kind: input, shape index: {}]
  %s7 = inlined_call_operand.vmem [shape: f32[32,288], index: 7, kind: input, shape index: {}]
  %s8 = inlined_call_operand.vmem [shape: f32[32,1], index: 8, kind: input, shape index: {}]
  %s9 = inlined_call_operand.vmem [shape: f32[3,32], index: 9, kind: input, shape index: {}]
  %s10 = inlined_call_operand.vmem [shape: f32[3,1], index: 10, kind: input, shape index: {}]
  %s11 = inlined_call_operand.vmem [shape: f32[3,288], index: 11, kind: input, shape index: {}]
  %s12 = inlined_call_operand.vmem [shape: f32[3,1], index: 12, kind: input, shape index: {}]
  %s13 = inlined_call_operand.vmem [shape: f32[2,3,256], index: 13, kind: output, shape index: {}]
  %s14 = sld [smem:[#allocation0]]
  $region85: #{spnet_forward.1} parent=0
    _
  %s16 = ssub.s32 1, %s14
  %s17 = scalar_select 0, %s16, %s14
  loop: start=0, step=1, limit=4
  $region2: #{spnet_forward.1} parent=0 // loop_pre_header
    _
  $region3: #{spnet_forward.1} parent=0 // loop_header
    %s19 = sphi 0, %s23
    %p20 = scmp.ge.s32.totalorder %s19, 4
    %s29 = sphi 0, %s31
    %s32 = sphi 0, %s29
    %s33 = sphi 0, %s32
    %s49 = sphi 0, %s33
    %s53 = sphi 0, %s53
    %s55 = sphi 0, %s53
    %s56 = sphi 0, %s55
    %s70 = sphi 0, %s56
    %s74 = sphi 0, %s74
    %s76 = sphi 0, %s74
    %s77 = sphi 0, %s76
    %s91 = sphi 0, %s77
    %s95 = sphi 0, %s95
    %s97 = sphi 0, %s95
    %s98 = sphi 0, %s97
    %s112 = sphi 0, %s98
    %s116 = sphi 0, %s116
    %s118 = sphi 0, %s116
    %s119 = sphi 0, %s118
    %s133 = sphi 0, %s119
    %s137 = sphi 0, %s137
    %s139 = sphi 0, %s137
    %s140 = sphi 0, %s139
    %s154 = sphi 0, %s140
    %s158 = sphi 0, %s158
    %s160 = sphi 0, %s158
    %s161 = sphi 0, %s160
    %s175 = sphi 0, %s161
    %s179 = sphi 0, %s179
    %s181 = sphi 0, %s179
    %s182 = sphi 0, %s181
    %s196 = sphi 0, %s182
    %s200 = sphi 0, %s200
    %s202 = sphi 0, %s200
    %s203 = sphi 0, %s202
    %s217 = sphi 0, %s203
    %s221 = sphi 0, %s221
    %s223 = sphi 0, %s221
    %s224 = sphi 0, %s223
    %s238 = sphi 0, %s224
    %s242 = sphi 0, %s242
    %s244 = sphi 0, %s242
    %s245 = sphi 0, %s244
    %s259 = sphi 0, %s245
    %s263 = sphi 0, %s263
    %s265 = sphi 0, %s263
    %s266 = sphi 0, %s265
    %s280 = sphi 0, %s266
    %s284 = sphi 0, %s284
    %s286 = sphi 0, %s284
    %s287 = sphi 0, %s286
    %s301 = sphi 0, %s287
    %s307 = sphi 0, %s309
    %s310 = sphi 0, %s307
    %s311 = sphi 0, %s310
    %s327 = sphi 0, %s311
  $region4: #{spnet_forward.1} parent=0 // loop_header_branch
    %22 = sbr.rel (%p20) target = $region8
  $region5: #{spnet_forward.1} parent=0 // loop_body
    %s24 = ssub.s32 %s19, 1
    %s25 = ssub.s32 %s19, 2
    %s26 = sadd.s32 %s19, 1
    %s27 = ssub.s32 %s19, %s26
    %p28 = scmp.eq.s32.totalorder %s27, 0
    %s30 = sadd.s32 %s29, 1
    %s31 = scalar_select %p28, %s29, %s30
    %p34 = pneg %p28
    %p35 = scmp.eq.s32.totalorder %s19, 1
    %p36 = por %p34, %p35
    %p37 = scmp.ne.s32.totalorder %s29, %s32
    %p38 = scmp.eq.s32.totalorder %s19, 0
    %p39 = por %p37, %p38
    %p40 = scmp.ne.s32.totalorder %s29, %s32
    %p41 = scmp.eq.s32.totalorder %s24, 1
    %p42 = por %p40, %p41
    %p43 = scmp.ne.s32.totalorder %s32, %s33
    %p44 = scmp.eq.s32.totalorder %s24, 0
    %p45 = por %p43, %p44
    %p46 = scmp.ne.s32.totalorder %s32, %s33
    %p47 = scmp.eq.s32.totalorder %s25, 1
    %p48 = por %p46, %p47
    %p50 = scmp.ne.s32.totalorder %s33, %s49
    %p51 = scmp.eq.s32.totalorder %s25, 0
    %p52 = por %p50, %p51
    %s54 = sadd.s32 %s53, 1
    %p57 = scmp.eq.s32.totalorder %s19, 1
    %p58 = scmp.ne.s32.totalorder %s53, %s55
    %p59 = scmp.eq.s32.totalorder %s19, 0
    %p60 = por %p58, %p59
    %p61 = scmp.ne.s32.totalorder %s53, %s55
    %p62 = scmp.eq.s32.totalorder %s24, 1
    %p63 = por %p61, %p62
    %p64 = scmp.ne.s32.totalorder %s55, %s56
    %p65 = scmp.eq.s32.totalorder %s24, 0
    %p66 = por %p64, %p65
    %p67 = scmp.ne.s32.totalorder %s55, %s56
    %p68 = scmp.eq.s32.totalorder %s25, 1
    %p69 = por %p67, %p68
    %p71 = scmp.ne.s32.totalorder %s56, %s70
    %p72 = scmp.eq.s32.totalorder %s25, 0
    %p73 = por %p71, %p72
    %s75 = sadd.s32 %s74, 1
    %p78 = scmp.eq.s32.totalorder %s19, 1
    %p79 = scmp.ne.s32.totalorder %s74, %s76
    %p80 = scmp.eq.s32.totalorder %s19, 0
    %p81 = por %p79, %p80
    %p82 = scmp.ne.s32.totalorder %s74, %s76
    %p83 = scmp.eq.s32.totalorder %s24, 1
    %p84 = por %p82, %p83
    %p85 = scmp.ne.s32.totalorder %s76, %s77
    %p86 = scmp.eq.s32.totalorder %s24, 0
    %p87 = por %p85, %p86
    %p88 = scmp.ne.s32.totalorder %s76, %s77
    %p89 = scmp.eq.s32.totalorder %s25, 1
    %p90 = por %p88, %p89
    %p92 = scmp.ne.s32.totalorder %s77, %s91
    %p93 = scmp.eq.s32.totalorder %s25, 0
    %p94 = por %p92, %p93
    %s96 = sadd.s32 %s95, 1
    %p99 = scmp.eq.s32.totalorder %s19, 1
    %p100 = scmp.ne.s32.totalorder %s95, %s97
    %p101 = scmp.eq.s32.totalorder %s19, 0
    %p102 = por %p100, %p101
    %p103 = scmp.ne.s32.totalorder %s95, %s97
    %p104 = scmp.eq.s32.totalorder %s24, 1
    %p105 = por %p103, %p104
    %p106 = scmp.ne.s32.totalorder %s97, %s98
    %p107 = scmp.eq.s32.totalorder %s24, 0
    %p108 = por %p106, %p107
    %p109 = scmp.ne.s32.totalorder %s97, %s98
    %p110 = scmp.eq.s32.totalorder %s25, 1
    %p111 = por %p109, %p110
    %p113 = scmp.ne.s32.totalorder %s98, %s112
    %p114 = scmp.eq.s32.totalorder %s25, 0
    %p115 = por %p113, %p114
    %s117 = sadd.s32 %s116, 1
    %p120 = scmp.eq.s32.totalorder %s19, 1
    %p121 = scmp.ne.s32.totalorder %s116, %s118
    %p122 = scmp.eq.s32.totalorder %s19, 0
    %p123 = por %p121, %p122
    %p124 = scmp.ne.s32.totalorder %s116, %s118
    %p125 = scmp.eq.s32.totalorder %s24, 1
    %p126 = por %p124, %p125
    %p127 = scmp.ne.s32.totalorder %s118, %s119
    %p128 = scmp.eq.s32.totalorder %s24, 0
    %p129 = por %p127, %p128
    %p130 = scmp.ne.s32.totalorder %s118, %s119
    %p131 = scmp.eq.s32.totalorder %s25, 1
    %p132 = por %p130, %p131
    %p134 = scmp.ne.s32.totalorder %s119, %s133
    %p135 = scmp.eq.s32.totalorder %s25, 0
    %p136 = por %p134, %p135
    %s138 = sadd.s32 %s137, 1
    %p141 = scmp.eq.s32.totalorder %s19, 1
    %p142 = scmp.ne.s32.totalorder %s137, %s139
    %p143 = scmp.eq.s32.totalorder %s19, 0
    %p144 = por %p142, %p143
    %p145 = scmp.ne.s32.totalorder %s137, %s139
    %p146 = scmp.eq.s32.totalorder %s24, 1
    %p147 = por %p145, %p146
    %p148 = scmp.ne.s32.totalorder %s139, %s140
    %p149 = scmp.eq.s32.totalorder %s24, 0
    %p150 = por %p148, %p149
    %p151 = scmp.ne.s32.totalorder %s139, %s140
    %p152 = scmp.eq.s32.totalorder %s25, 1
    %p153 = por %p151, %p152
    %p155 = scmp.ne.s32.totalorder %s140, %s154
    %p156 = scmp.eq.s32.totalorder %s25, 0
    %p157 = por %p155, %p156
    %s159 = sadd.s32 %s158, 1
    %p162 = scmp.eq.s32.totalorder %s19, 1
    %p163 = scmp.ne.s32.totalorder %s158, %s160
    %p164 = scmp.eq.s32.totalorder %s19, 0
    %p165 = por %p163, %p164
    %p166 = scmp.ne.s32.totalorder %s158, %s160
    %p167 = scmp.eq.s32.totalorder %s24, 1
    %p168 = por %p166, %p167
    %p169 = scmp.ne.s32.totalorder %s160, %s161
    %p170 = scmp.eq.s32.totalorder %s24, 0
    %p171 = por %p169, %p170
    %p172 = scmp.ne.s32.totalorder %s160, %s161
    %p173 = scmp.eq.s32.totalorder %s25, 1
    %p174 = por %p172, %p173
    %p176 = scmp.ne.s32.totalorder %s161, %s175
    %p177 = scmp.eq.s32.totalorder %s25, 0
    %p178 = por %p176, %p177
    %s180 = sadd.s32 %s179, 1
    %p183 = scmp.eq.s32.totalorder %s19, 1
    %p184 = scmp.ne.s32.totalorder %s179, %s181
    %p185 = scmp.eq.s32.totalorder %s19, 0
    %p186 = por %p184, %p185
    %p187 = scmp.ne.s32.totalorder %s179, %s181
    %p188 = scmp.eq.s32.totalorder %s24, 1
    %p189 = por %p187, %p188
    %p190 = scmp.ne.s32.totalorder %s181, %s182
    %p191 = scmp.eq.s32.totalorder %s24, 0
    %p192 = por %p190, %p191
    %p193 = scmp.ne.s32.totalorder %s181, %s182
    %p194 = scmp.eq.s32.totalorder %s25, 1
    %p195 = por %p193, %p194
    %p197 = scmp.ne.s32.totalorder %s182, %s196
    %p198 = scmp.eq.s32.totalorder %s25, 0
    %p199 = por %p197, %p198
    %s201 = sadd.s32 %s200, 1
    %p204 = scmp.eq.s32.totalorder %s19, 1
    %p205 = scmp.ne.s32.totalorder %s200, %s202
    %p206 = scmp.eq.s32.totalorder %s19, 0
    %p207 = por %p205, %p206
    %p208 = scmp.ne.s32.totalorder %s200, %s202
    %p209 = scmp.eq.s32.totalorder %s24, 1
    %p210 = por %p208, %p209
    %p211 = scmp.ne.s32.totalorder %s202, %s203
    %p212 = scmp.eq.s32.totalorder %s24, 0
    %p213 = por %p211, %p212
    %p214 = scmp.ne.s32.totalorder %s202, %s203
    %p215 = scmp.eq.s32.totalorder %s25, 1
    %p216 = por %p214, %p215
    %p218 = scmp.ne.s32.totalorder %s203, %s217
    %p219 = scmp.eq.s32.totalorder %s25, 0
    %p220 = por %p218, %p219
    %s222 = sadd.s32 %s221, 1
    %p225 = scmp.eq.s32.totalorder %s19, 1
    %p226 = scmp.ne.s32.totalorder %s221, %s223
    %p227 = scmp.eq.s32.totalorder %s19, 0
    %p228 = por %p226, %p227
    %p229 = scmp.ne.s32.totalorder %s221, %s223
    %p230 = scmp.eq.s32.totalorder %s24, 1
    %p231 = por %p229, %p230
    %p232 = scmp.ne.s32.totalorder %s223, %s224
    %p233 = scmp.eq.s32.totalorder %s24, 0
    %p234 = por %p232, %p233
    %p235 = scmp.ne.s32.totalorder %s223, %s224
    %p236 = scmp.eq.s32.totalorder %s25, 1
    %p237 = por %p235, %p236
    %p239 = scmp.ne.s32.totalorder %s224, %s238
    %p240 = scmp.eq.s32.totalorder %s25, 0
    %p241 = por %p239, %p240
    %s243 = sadd.s32 %s242, 1
    %p246 = scmp.eq.s32.totalorder %s19, 1
    %p247 = scmp.ne.s32.totalorder %s242, %s244
    %p248 = scmp.eq.s32.totalorder %s19, 0
    %p249 = por %p247, %p248
    %p250 = scmp.ne.s32.totalorder %s242, %s244
    %p251 = scmp.eq.s32.totalorder %s24, 1
    %p252 = por %p250, %p251
    %p253 = scmp.ne.s32.totalorder %s244, %s245
    %p254 = scmp.eq.s32.totalorder %s24, 0
    %p255 = por %p253, %p254
    %p256 = scmp.ne.s32.totalorder %s244, %s245
    %p257 = scmp.eq.s32.totalorder %s25, 1
    %p258 = por %p256, %p257
    %p260 = scmp.ne.s32.totalorder %s245, %s259
    %p261 = scmp.eq.s32.totalorder %s25, 0
    %p262 = por %p260, %p261
    %s264 = sadd.s32 %s263, 1
    %p267 = scmp.eq.s32.totalorder %s19, 1
    %p268 = scmp.ne.s32.totalorder %s263, %s265
    %p269 = scmp.eq.s32.totalorder %s19, 0
    %p270 = por %p268, %p269
    %p271 = scmp.ne.s32.totalorder %s263, %s265
    %p272 = scmp.eq.s32.totalorder %s24, 1
    %p273 = por %p271, %p272
    %p274 = scmp.ne.s32.totalorder %s265, %s266
    %p275 = scmp.eq.s32.totalorder %s24, 0
    %p276 = por %p274, %p275
    %p277 = scmp.ne.s32.totalorder %s265, %s266
    %p278 = scmp.eq.s32.totalorder %s25, 1
    %p279 = por %p277, %p278
    %p281 = scmp.ne.s32.totalorder %s266, %s280
    %p282 = scmp.eq.s32.totalorder %s25, 0
    %p283 = por %p281, %p282
    %s285 = sadd.s32 %s284, 1
    %p288 = scmp.eq.s32.totalorder %s19, 1
    %p289 = scmp.ne.s32.totalorder %s284, %s286
    %p290 = scmp.eq.s32.totalorder %s19, 0
    %p291 = por %p289, %p290
    %p292 = scmp.ne.s32.totalorder %s284, %s286
    %p293 = scmp.eq.s32.totalorder %s24, 1
    %p294 = por %p292, %p293
    %p295 = scmp.ne.s32.totalorder %s286, %s287
    %p296 = scmp.eq.s32.totalorder %s24, 0
    %p297 = por %p295, %p296
    %p298 = scmp.ne.s32.totalorder %s286, %s287
    %p299 = scmp.eq.s32.totalorder %s25, 1
    %p300 = por %p298, %p299
    %p302 = scmp.ne.s32.totalorder %s287, %s301
    %p303 = scmp.eq.s32.totalorder %s25, 0
    %p304 = por %p302, %p303
    %s305 = ssub.s32 %s19, %s26
    %p306 = scmp.eq.s32.totalorder %s305, 0
    %s308 = sadd.s32 %s307, 1
    %s309 = scalar_select %p306, %s307, %s308
    %p312 = pneg %p306
    %p313 = scmp.eq.s32.totalorder %s19, 1
    %p314 = por %p312, %p313
    %p315 = scmp.ne.s32.totalorder %s307, %s310
    %p316 = scmp.eq.s32.totalorder %s19, 0
    %p317 = por %p315, %p316
    %p318 = scmp.ne.s32.totalorder %s307, %s310
    %p319 = scmp.eq.s32.totalorder %s24, 1
    %p320 = por %p318, %p319
    %p321 = scmp.ne.s32.totalorder %s310, %s311
    %p322 = scmp.eq.s32.totalorder %s24, 0
    %p323 = por %p321, %p322
    %p324 = scmp.ne.s32.totalorder %s310, %s311
    %p325 = scmp.eq.s32.totalorder %s25, 1
    %p326 = por %p324, %p325
    %p328 = scmp.ne.s32.totalorder %s311, %s327
    %p329 = scmp.eq.s32.totalorder %s25, 0
    %p330 = por %p328, %p329
    %p331 = scmp.le.s32.totalorder 1, %s19
    %p332 = scmp.lt.s32.totalorder %s19, 3
    %p333 = pnand %p331, %p332
    %p334 = pneg %p333
    // Predicated region
    $region9: #{spnet_forward.1} parent=5 // pred_check
      _
    $region10: #{spnet_forward.1} parent=5 // pred_check_branch
      %336 = sbr.rel (%p333) target = $region12
    $region11: #{spnet_forward.1} parent=5 // pred_region
      %s337 = ssub.s32 %s19, 1
      // Predicated region
      $region13: #{spnet_forward.1} parent=11 // pred_check
        %p338 = pneg %p66
      $region14: #{spnet_forward.1} parent=11 // pred_check_branch
        %340 = sbr.rel (%p338) target = $region16
      $region15: #{spnet_forward.1} parent=11 // pred_region
        _
      $region16: #{spnet_forward.1} parent=11 // pred_fallthru
        _
      // Predicated region
      $region17: #{spnet_forward.1} parent=11 // pred_check
        %p341 = pneg %p87
      $region18: #{spnet_forward.1} parent=11 // pred_check_branch
        %343 = sbr.rel (%p341) target = $region20
      $region19: #{spnet_forward.1} parent=11 // pred_region
        _
      $region20: #{spnet_forward.1} parent=11 // pred_fallthru
        _
      // Predicated region
      $region21: #{spnet_forward.1} parent=11 // pred_check
        %p344 = pneg %p108
      $region22: #{spnet_forward.1} parent=11 // pred_check_branch
        %346 = sbr.rel (%p344) target = $region24
      $region23: #{spnet_forward.1} parent=11 // pred_region
        _
      $region24: #{spnet_forward.1} parent=11 // pred_fallthru
        _
      // Predicated region
      $region25: #{spnet_forward.1} parent=11 // pred_check
        %p347 = pneg %p129
      $region26: #{spnet_forward.1} parent=11 // pred_check_branch
        %349 = sbr.rel (%p347) target = $region28
      $region27: #{spnet_forward.1} parent=11 // pred_region
        _
      $region28: #{spnet_forward.1} parent=11 // pred_fallthru
        _
      // Predicated region
      $region29: #{spnet_forward.1} parent=11 // pred_check
        %p350 = pneg %p150
      $region30: #{spnet_forward.1} parent=11 // pred_check_branch
        %352 = sbr.rel (%p350) target = $region32
      $region31: #{spnet_forward.1} parent=11 // pred_region
        _
      $region32: #{spnet_forward.1} parent=11 // pred_fallthru
        _
      // Predicated region
      $region33: #{spnet_forward.1} parent=11 // pred_check
        %p353 = pneg %p171
      $region34: #{spnet_forward.1} parent=11 // pred_check_branch
        %355 = sbr.rel (%p353) target = $region36
      $region35: #{spnet_forward.1} parent=11 // pred_region
        _
      $region36: #{spnet_forward.1} parent=11 // pred_fallthru
        _
      // Predicated region
      $region37: #{spnet_forward.1} parent=11 // pred_check
        %p356 = pneg %p192
      $region38: #{spnet_forward.1} parent=11 // pred_check_branch
        %358 = sbr.rel (%p356) target = $region40
      $region39: #{spnet_forward.1} parent=11 // pred_region
        _
      $region40: #{spnet_forward.1} parent=11 // pred_fallthru
        _
      // Predicated region
      $region41: #{spnet_forward.1} parent=11 // pred_check
        %p359 = pneg %p213
      $region42: #{spnet_forward.1} parent=11 // pred_check_branch
        %361 = sbr.rel (%p359) target = $region44
      $region43: #{spnet_forward.1} parent=11 // pred_region
        _
      $region44: #{spnet_forward.1} parent=11 // pred_fallthru
        _
      // Predicated region
      $region45: #{spnet_forward.1} parent=11 // pred_check
        %p362 = pneg %p234
      $region46: #{spnet_forward.1} parent=11 // pred_check_branch
        %364 = sbr.rel (%p362) target = $region48
      $region47: #{spnet_forward.1} parent=11 // pred_region
        _
      $region48: #{spnet_forward.1} parent=11 // pred_fallthru
        _
      // Predicated region
      $region49: #{spnet_forward.1} parent=11 // pred_check
        %p365 = pneg %p255
      $region50: #{spnet_forward.1} parent=11 // pred_check_branch
        %367 = sbr.rel (%p365) target = $region52
      $region51: #{spnet_forward.1} parent=11 // pred_region
        _
      $region52: #{spnet_forward.1} parent=11 // pred_fallthru
        _
      // Predicated region
      $region53: #{spnet_forward.1} parent=11 // pred_check
        %p368 = pneg %p276
      $region54: #{spnet_forward.1} parent=11 // pred_check_branch
        %370 = sbr.rel (%p368) target = $region56
      $region55: #{spnet_forward.1} parent=11 // pred_region
        _
      $region56: #{spnet_forward.1} parent=11 // pred_fallthru
        _
      // Predicated region
      $region57: #{spnet_forward.1} parent=11 // pred_check
        %p371 = pneg %p297
      $region58: #{spnet_forward.1} parent=11 // pred_check_branch
        %373 = sbr.rel (%p371) target = $region60
      $region59: #{spnet_forward.1} parent=11 // pred_region
        _
      $region60: #{spnet_forward.1} parent=11 // pred_fallthru
        _
    $region12: #{spnet_forward.1} parent=5 // pred_fallthru
      _
    %p374 = scmp.lt.s32.totalorder %s19, 2
    // Predicated region
    $region61: #{spnet_forward.1} parent=5 // pred_check
      %p375 = pneg %p374
    $region62: #{spnet_forward.1} parent=5 // pred_check_branch
      %377 = sbr.rel (%p375) target = $region64
    $region63: #{spnet_forward.1} parent=5 // pred_region
      // Predicated region
      $region65: #{spnet_forward.1} parent=63 // pred_check
        %p378 = pneg %p39
      $region66: #{spnet_forward.1} parent=63 // pred_check_branch
        %380 = sbr.rel (%p378) target = $region68
      $region67: #{spnet_forward.1} parent=63 // pred_region
        %p381 = scmp.lt.s32.totalorder %s19, 1
        %s382 = scalar_select %p381, %s19, 1
        %s383 = smul.addr %s382, 2
        %s384 = smul.addr %s383, 8
        %s385 = scalar_lea.vmem %s0, %s384
      $region68: #{spnet_forward.1} parent=63 // pred_fallthru
        _
    $region64: #{spnet_forward.1} parent=5 // pred_fallthru
      _
    %p386 = scmp.le.s32.totalorder 1, %s19
    %p387 = scmp.lt.s32.totalorder %s19, 3
    %p388 = pnand %p386, %p387
    %p389 = pneg %p388
    // Predicated region
    $region69: #{spnet_forward.1} parent=5 // pred_check
      _
    $region70: #{spnet_forward.1} parent=5 // pred_check_branch
      %391 = sbr.rel (%p388) target = $region72
    $region71: #{spnet_forward.1} parent=5 // pred_region
      %s392 = ssub.s32 %s19, 1
      %p393 = scmp.lt.s32.totalorder %s24, 1
      %s394 = scalar_select %p393, %s24, 1
      %s395 = smul.addr %s394, 2
      %s396 = smul.addr %s395, 8
      %s397 = scalar_lea.vmem %s0, %s396
      %p398 = pneg %p45
      %p399 = pneg %p42
      %p400 = pneg %p66
      %p401 = pneg %p63
      %p402 = pneg %p87
      %p403 = pneg %p84
      %p404 = pneg %p108
      %p405 = pneg %p105
      %p406 = pneg %p129
      %p407 = pneg %p126
      %p408 = pneg %p150
      %p409 = pneg %p147
      %p410 = pneg %p171
      %p411 = pneg %p168
      %p412 = pneg %p192
      %p413 = pneg %p189
      %p414 = pneg %p213
      %p415 = pneg %p210
      %p416 = pneg %p234
      %p417 = pneg %p231
      %p418 = pneg %p255
      %p419 = pneg %p252
      %p420 = pneg %p276
      %p421 = pneg %p273
      %p422 = pneg %p297
      %p423 = pneg %p294
      %p424 = pneg %p323
      %p425 = pneg %p320
      %p426 = scmp.lt.s32.totalorder %s24, 1
      %s427 = scalar_select %p426, %s24, 1
      %s428 = smul.addr %s427, 2
      %s429 = smul.addr %s428, 4
      %s430 = scalar_lea.vmem %s13, %s429
      %p431 = scmp.lt.s32.totalorder %s24, 1
      %s432 = scalar_select %p431, %s24, 1
      %s433 = smul.addr %s432, 2
      %s434 = smul.addr %s433, 8
      %s435 = scalar_lea.vmem %s0, %s434
      %p436 = scmp.lt.s32.totalorder %s24, 1
      %s437 = scalar_select %p436, %s24, 1
      %s438 = smul.addr %s437, 2
      %s439 = smul.addr %s438, 4
      %s440 = scalar_lea.vmem %s13, %s439
      %v441 = vlaneseq
      %v442 = vand.u32 %v441, 127
      %v443 = vadd.s32 %v442, 128
      %vm444 = vcmp.lt.s32.totalorder %v442, 0
      %v445 = vsub.s32 0, %v442
      %v446 = vsel %vm444, %v445, %v442
      %v447 = vshrl.u32 %v446, 4
      %v448 = vand.u32 %v446, 15
      %v449 = vsub.s32 0, %v448
      %v450 = vsel %vm444, %v449, %v448
      %vm451 = vcmp.lt.s32.totalorder %v443, 0
      %v452 = vsub.s32 0, %v443
      %v453 = vsel %vm451, %v452, %v443
      %v454 = vshrl.u32 %v453, 4
      %v455 = vand.u32 %v453, 15
      %v456 = vsub.s32 0, %v455
      %v457 = vsel %vm451, %v456, %v455
      %vm458 = vcmp.ne.s32.totalorder %v450, 0
      %vm459 = vcmp.ne.s32.totalorder %v457, 0
      %vm460 = vcmp.lt.s32.totalorder %v450, 0
      %vm461 = vcmp.lt.s32.totalorder %v457, 0
      %vm462 = vmand %vm460, %vm458
      %vm463 = vmand %vm461, %vm459
      %v464 = vadd.s32 %v450, 16
      %v465 = vadd.s32 %v457, 16
      %v466 = vsel %vm462, %v464, %v450
      %v467 = vsel %vm463, %v465, %v457
      %vm468 = vcmp.ne.s32.totalorder %v466, 0
      %vm469 = vcmp.ne.s32.totalorder %v467, 0
      %v470 = vsel %vm468, 1, 0
      %v471 = vsel %vm469, 1, 0
      %v472 = vcvt.s32.f32 %v470
      %v473 = vcvt.s32.f32 %v471
      %vm474 = vcmp.ne.s32.totalorder %v466, 15
      %vm475 = vcmp.ne.s32.totalorder %v467, 15
      %v476 = vsel %vm474, 1, 0
      %v477 = vsel %vm475, 1, 0
      %v478 = vcvt.s32.f32 %v476
      %v479 = vcvt.s32.f32 %v477
      %v480 = vld [vmem:[%s435] sm:$0xff]
      %v481 = vld [vmem:[%s435 + $0x8] sm:$0xff]
      %v482 = vld [vmem:[%s1] sm:$0xff]
      %v483 = vld [vmem:[%s1 + $0x8] sm:$0xff]
      %v484 = vld [vmem:[%s1 + $0x10] sm:$0xff]
      %v485 = vld [vmem:[%s1 + $0x18] sm:$0xff]
      %v486 = vld [vmem:[%s2] sm:$0xff]
      %v487 = vld [vmem:[%s2 + $0x8] sm:$0xff]
      %v488 = vld [vmem:[%s2 + $0x10] sm:$0xff]
      %v489 = vld [vmem:[%s2 + $0x18] sm:$0xff]
      %v490 = vld [vmem:[%s3] sm:$0xff]
      %v491 = vld [vmem:[%s3 + $0x8] sm:$0xff]
      %v492 = vld [vmem:[%s3 + $0x10] sm:$0xff]
      %v493 = vld [vmem:[%s3 + $0x18] sm:$0xff]
      %v494 = vld [vmem:[%s4] sm:$0xff]
      %v495 = vld [vmem:[%s4 + $0x8] sm:$0xff]
      %v496 = vld [vmem:[%s4 + $0x10] sm:$0xff]
      %v497 = vld [vmem:[%s4 + $0x18] sm:$0xff]
      %v498 = vld [vmem:[%s5] sm:$0xff]
      %v499 = vld [vmem:[%s5 + $0x8] sm:$0xff]
      %v500 = vld [vmem:[%s5 + $0x10] sm:$0xff]
      %v501 = vld [vmem:[%s5 + $0x18] sm:$0xff]
      %v502 = vld [vmem:[%s6] sm:$0xff]
      %v503 = vld [vmem:[%s6 + $0x8] sm:$0xff]
      %v504 = vld [vmem:[%s6 + $0x10] sm:$0xff]
      %v505 = vld [vmem:[%s6 + $0x18] sm:$0xff]
      %v506 = vmul.f32 %v480, 0.5
      %v507 = vmul.f32 %v481, 0.5
      %v508 = vmul.f32 %v480, 0.70710677
      %v509 = vmul.f32 %v481, 0.70710677
      %v510 = verf.f32.pop %v508
      %v511 = verf.f32.pop %v509
      %v512 = vadd.f32 %v510, 1.0
      %v513 = vadd.f32 %v511, 1.0
      %v514 = vmul.f32 %v506, %v512
      %v515 = vmul.f32 %v507, %v513
      %520 = vrot.lane.b32.xlu0 %v480, 17
      %v521 = vpop.permute.xlu0 %520
      %522 = vrot.lane.b32.xlu0 %v481, 17
      %v523 = vpop.permute.xlu0 %522
      %524 = vrot.lane.b32.xlu0 %v514, 17
      %v525 = vpop.permute.xlu0 %524
      %526 = vrot.lane.b32.xlu0 %v515, 17
      %v527 = vpop.permute.xlu0 %526
      %vm528 = vcmask 138240
      %v529 = vsel %vm528, %v521, %v523
      %v530 = vsel %vm528, %v525, %v527
      %v537 = vsel %vm528, 0.0, %v521
      %v538 = vsel %vm528, 0.0, %v525
      %v539 = vsel %vm528, %v523, 0.0
      %v540 = vsel %vm528, %v527, 0.0
      %v541 = vmul.f32 %v537, %v472
      %v542 = vmul.f32 %v529, %v473
      %v543 = vmul.f32 %v538, %v472
      %v544 = vmul.f32 %v530, %v473
      %547 = vrot.lane.b32.xlu0 %v478, 2
      %v548 = vpop.permute.xlu0 %547
      %549 = vrot.lane.b32.xlu0 %v479, 2
      %v550 = vpop.permute.xlu0 %549
      %vm551 = vcmask 15360
      %v552 = vsel %vm551, %v548, %v550
      %v556 = vmul.f32 %v537, %v548
      %v557 = vmul.f32 %v529, %v552
      %v558 = vmul.f32 %v539, %v550
      %v559 = vmul.f32 %v538, %v548
      %v560 = vmul.f32 %v530, %v552
      %v561 = vmul.f32 %v540, %v550
      %564 = vrot.lane.b32.xlu0 %v472, 16
      %v565 = vpop.permute.xlu0 %564
      %566 = vrot.lane.b32.xlu0 %v473, 16
      %v567 = vpop.permute.xlu0 %566
      %vm568 = vcmask 130048
      %v569 = vsel %vm568, %v565, %v567
      %v573 = vmul.f32 %v537, %v565
      %v574 = vmul.f32 %v529, %v569
      %v575 = vmul.f32 %v539, %v567
      %v576 = vmul.f32 %v538, %v565
      %v577 = vmul.f32 %v530, %v569
      %v578 = vmul.f32 %v540, %v567
      %579 = vrot.lane.b32.xlu0 %v478, 18
      %v580 = vpop.permute.xlu0 %579
      %581 = vrot.lane.b32.xlu0 %v479, 18
      %v582 = vpop.permute.xlu0 %581
      %vm583 = vcmask 146432
      %v584 = vsel %vm583, %v580, %v582
      %v588 = vmul.f32 %v537, %v580
      %v589 = vmul.f32 %v529, %v584
      %v590 = vmul.f32 %v539, %v582
      %v591 = vmul.f32 %v538, %v580
      %v592 = vmul.f32 %v530, %v584
      %v593 = vmul.f32 %v540, %v582
      %594 = vrot.lane.b32.xlu0 %v472, 32
      %v595 = vpop.permute.xlu0 %594
      %596 = vrot.lane.b32.xlu0 %v473, 32
      %v597 = vpop.permute.xlu0 %596
      %vm598 = vcmask 261120
      %v599 = vsel %vm598, %v595, %v597
      %v603 = vmul.f32 %v537, %v595
      %v604 = vmul.f32 %v529, %v599
      %v605 = vmul.f32 %v539, %v597
      %v606 = vmul.f32 %v538, %v595
      %v607 = vmul.f32 %v530, %v599
      %v608 = vmul.f32 %v540, %v597
      %609 = vrot.lane.b32.xlu0 %v478, 34
      %v610 = vpop.permute.xlu0 %609
      %611 = vrot.lane.b32.xlu0 %v479, 34
      %v612 = vpop.permute.xlu0 %611
      %vm613 = vcmask 277504
      %v614 = vsel %vm613, %v610, %v612
      %v618 = vmul.f32 %v537, %v610
      %v619 = vmul.f32 %v529, %v614
      %v620 = vmul.f32 %v539, %v612
      %v621 = vmul.f32 %v538, %v610
      %v622 = vmul.f32 %v530, %v614
      %v623 = vmul.f32 %v540, %v612
      %626 = vrot.lane.b32.xlu0 %v537, 127
      %v627 = vpop.permute.xlu0 %626
      %628 = vrot.lane.b32.xlu0 %v529, 127
      %v629 = vpop.permute.xlu0 %628
      %630 = vrot.lane.b32.xlu0 %v539, 127
      %v631 = vpop.permute.xlu0 %630
      %vm632 = vcmask 1039360
      %v633 = vsel %vm632, %v627, %v629
      %v634 = vsel %vm632, %v629, %v631
      %640 = vrot.lane.b32.xlu0 %v556, 126
      %v641 = vpop.permute.xlu0 %640
      %642 = vrot.lane.b32.xlu0 %v557, 126
      %v643 = vpop.permute.xlu0 %642
      %644 = vrot.lane.b32.xlu0 %v558, 126
      %v645 = vpop.permute.xlu0 %644
      %vm646 = vcmask 1031168
      %v647 = vsel %vm646, %v641, %v643
      %v648 = vsel %vm646, %v643, %v645
      %654 = vrot.lane.b32.xlu0 %v573, 112
      %v655 = vpop.permute.xlu0 %654
      %656 = vrot.lane.b32.xlu0 %v574, 112
      %v657 = vpop.permute.xlu0 %656
      %658 = vrot.lane.b32.xlu0 %v575, 112
      %v659 = vpop.permute.xlu0 %658
      %vm660 = vcmask 916480
      %v661 = vsel %vm660, %v655, %v657
      %v662 = vsel %vm660, %v657, %v659
      %665 = vrot.lane.b32.xlu0 %v537, 111
      %v666 = vpop.permute.xlu0 %665
      %667 = vrot.lane.b32.xlu0 %v529, 111
      %v668 = vpop.permute.xlu0 %667
      %669 = vrot.lane.b32.xlu0 %v539, 111
      %v670 = vpop.permute.xlu0 %669
      %vm671 = vcmask 908288
      %v672 = vsel %vm671, %v666, %v668
      %v673 = vsel %vm671, %v668, %v670
      %679 = vrot.lane.b32.xlu0 %v588, 110
      %v680 = vpop.permute.xlu0 %679
      %681 = vrot.lane.b32.xlu0 %v589, 110
      %v682 = vpop.permute.xlu0 %681
      %683 = vrot.lane.b32.xlu0 %v590, 110
      %v684 = vpop.permute.xlu0 %683
      %vm685 = vcmask 900096
      %v686 = vsel %vm685, %v680, %v682
      %v687 = vsel %vm685, %v682, %v684
      %693 = vrot.lane.b32.xlu0 %v603, 96
      %v694 = vpop.permute.xlu0 %693
      %695 = vrot.lane.b32.xlu0 %v604, 96
      %v696 = vpop.permute.xlu0 %695
      %697 = vrot.lane.b32.xlu0 %v605, 96
      %v698 = vpop.permute.xlu0 %697
      %vm699 = vcmask 785408
      %v700 = vsel %vm699, %v694, %v696
      %v701 = vsel %vm699, %v696, %v698
      %704 = vrot.lane.b32.xlu0 %v537, 95
      %v705 = vpop.permute.xlu0 %704
      %706 = vrot.lane.b32.xlu0 %v529, 95
      %v707 = vpop.permute.xlu0 %706
      %708 = vrot.lane.b32.xlu0 %v539, 95
      %v709 = vpop.permute.xlu0 %708
      %vm710 = vcmask 777216
      %v711 = vsel %vm710, %v705, %v707
      %v712 = vsel %vm710, %v707, %v709
      %718 = vrot.lane.b32.xlu0 %v618, 94
      %v719 = vpop.permute.xlu0 %718
      %720 = vrot.lane.b32.xlu0 %v619, 94
      %v721 = vpop.permute.xlu0 %720
      %722 = vrot.lane.b32.xlu0 %v620, 94
      %v723 = vpop.permute.xlu0 %722
      %vm724 = vcmask 769024
      %v725 = vsel %vm724, %v719, %v721
      %v726 = vsel %vm724, %v721, %v723
      %731 = vrot.lane.b32.xlu0 %v538, 127
      %v732 = vpop.permute.xlu0 %731
      %733 = vrot.lane.b32.xlu0 %v530, 127
      %v734 = vpop.permute.xlu0 %733
      %735 = vrot.lane.b32.xlu0 %v540, 127
      %v736 = vpop.permute.xlu0 %735
      %v737 = vsel %vm632, %v732, %v734
      %v738 = vsel %vm632, %v734, %v736
      %744 = vrot.lane.b32.xlu0 %v559, 126
      %v745 = vpop.permute.xlu0 %744
      %746 = vrot.lane.b32.xlu0 %v560, 126
      %v747 = vpop.permute.xlu0 %746
      %748 = vrot.lane.b32.xlu0 %v561, 126
      %v749 = vpop.permute.xlu0 %748
      %v750 = vsel %vm646, %v745, %v747
      %v751 = vsel %vm646, %v747, %v749
      %757 = vrot.lane.b32.xlu0 %v576, 112
      %v758 = vpop.permute.xlu0 %757
      %759 = vrot.lane.b32.xlu0 %v577, 112
      %v760 = vpop.permute.xlu0 %759
      %761 = vrot.lane.b32.xlu0 %v578, 112
      %v762 = vpop.permute.xlu0 %761
      %v763 = vsel %vm660, %v758, %v760
      %v764 = vsel %vm660, %v760, %v762
      %767 = vrot.lane.b32.xlu0 %v538, 111
      %v768 = vpop.permute.xlu0 %767
      %769 = vrot.lane.b32.xlu0 %v530, 111
      %v770 = vpop.permute.xlu0 %769
      %771 = vrot.lane.b32.xlu0 %v540, 111
      %v772 = vpop.permute.xlu0 %771
      %v773 = vsel %vm671, %v768, %v770
      %v774 = vsel %vm671, %v770, %v772
      %780 = vrot.lane.b32.xlu0 %v591, 110
      %v781 = vpop.permute.xlu0 %780
      %782 = vrot.lane.b32.xlu0 %v592, 110
      %v783 = vpop.permute.xlu0 %782
      %784 = vrot.lane.b32.xlu0 %v593, 110
      %v785 = vpop.permute.xlu0 %784
      %v786 = vsel %vm685, %v781, %v783
      %v787 = vsel %vm685, %v783, %v785
      %793 = vrot.lane.b32.xlu0 %v606, 96
      %v794 = vpop.permute.xlu0 %793
      %795 = vrot.lane.b32.xlu0 %v607, 96
      %v796 = vpop.permute.xlu0 %795
      %797 = vrot.lane.b32.xlu0 %v608, 96
      %v798 = vpop.permute.xlu0 %797
      %v799 = vsel %vm699, %v794, %v796
      %v800 = vsel %vm699, %v796, %v798
      %803 = vrot.lane.b32.xlu0 %v538, 95
      %v804 = vpop.permute.xlu0 %803
      %805 = vrot.lane.b32.xlu0 %v530, 95
      %v806 = vpop.permute.xlu0 %805
      %807 = vrot.lane.b32.xlu0 %v540, 95
      %v808 = vpop.permute.xlu0 %807
      %v809 = vsel %vm710, %v804, %v806
      %v810 = vsel %vm710, %v806, %v808
      %816 = vrot.lane.b32.xlu0 %v621, 94
      %v817 = vpop.permute.xlu0 %816
      %818 = vrot.lane.b32.xlu0 %v622, 94
      %v819 = vpop.permute.xlu0 %818
      %820 = vrot.lane.b32.xlu0 %v623, 94
      %v821 = vpop.permute.xlu0 %820
      %v822 = vsel %vm724, %v817, %v819
      %v823 = vsel %vm724, %v819, %v821
      %827 = vset.pattern.permute.xlu0 0
      %828 = vperm.xlu0 %827, %v486
      %v829 = vpop.permute.xlu0 %828
      %832 = vset.pattern.permute.xlu0 0
      %833 = vperm.xlu0 %832, %v487
      %v834 = vpop.permute.xlu0 %833
      %837 = vset.pattern.permute.xlu0 0
      %838 = vperm.xlu0 %837, %v488
      %v839 = vpop.permute.xlu0 %838
      %842 = vset.pattern.permute.xlu0 0
      %843 = vperm.xlu0 %842, %v489
      %v844 = vpop.permute.xlu0 %843
      %vm846 = vcmask 588800
      %v848 = vsel %vm846, %v482, 0
      %v851 = vsel %vm846, %v483, 0
      %v854 = vsel %vm846, %v484, 0
      %v857 = vsel %vm846, %v485, 0
      %859 = vmatprep.subr.mxu0 0.0
      %860 = vmatpush1.msra.mxu0 0.0
      %861 = vmatprep.subr.mxu0 0.0
      %862 = vmatpush1.msra.mxu0 0.0
      %863 = vmatprep.subr.mxu0 0.0
      %864 = vmatpush1.msra.mxu0 0.0
      %865 = vmatprep.subr.mxu0 0.0
      %866 = vmatpush1.msra.mxu0 0.0
      %867 = vmatprep.subr.mxu0 0.0
      %868 = vmatpush1.msra.mxu0 0.0
      %869 = vmatprep.subr.mxu0 0.0
      %870 = vmatpush1.msra.mxu0 0.0
      %871 = vmatprep.subr.mxu0 0.0
      %872 = vmatpush1.msra.mxu0 0.0
      %873 = vmatprep.subr.mxu0 %v823
      %874 = vmatpush1.msra.mxu0 %v822
      %875 = vmatprep.subr.mxu0 %v810
      %876 = vmatpush1.msra.mxu0 %v809
      %877 = vmatprep.subr.mxu0 %v800
      %878 = vmatpush1.msra.mxu0 %v799
      %879 = vmatprep.subr.mxu0 %v787
      %880 = vmatpush1.msra.mxu0 %v786
      %881 = vmatprep.subr.mxu0 %v774
      %882 = vmatpush1.msra.mxu0 %v773
      %883 = vmatprep.subr.mxu0 %v764
      %884 = vmatpush1.msra.mxu0 %v763
      %885 = vmatprep.subr.mxu0 %v751
      %886 = vmatpush1.msra.mxu0 %v750
      %887 = vmatprep.subr.mxu0 %v738
      %888 = vmatpush1.msra.mxu0 %v737
      %889 = vmatprep.subr.mxu0 %v544
      %890 = vmatpush1.msra.mxu0 %v543
      %891 = vmatprep.subr.mxu0 0.0
      %892 = vmatpush2.msra.mxu0 0.0
      %893 = vmatprep.subr.mxu0 0.0
      %894 = vmatpush2.msra.mxu0 0.0
      %895 = vmatprep.subr.mxu0 0.0
      %896 = vmatpush2.msra.mxu0 0.0
      %897 = vmatprep.subr.mxu0 0.0
      %898 = vmatpush2.msra.mxu0 0.0
      %899 = vmatprep.subr.mxu0 0.0
      %900 = vmatpush2.msra.mxu0 0.0
      %901 = vmatprep.subr.mxu0 0.0
      %902 = vmatpush2.msra.mxu0 0.0
      %903 = vmatprep.subr.mxu0 0.0
      %904 = vmatpush2.msra.mxu0 0.0
      %905 = vmatprep.subr.mxu0 0.0
      %906 = vmatpush2.msra.mxu0 0.0
      %907 = vmatprep.subr.mxu0 0.0
      %908 = vmatpush2.msra.mxu0 0.0
      %909 = vmatprep.subr.mxu0 0.0
      %910 = vmatpush2.msra.mxu0 0.0
      %911 = vmatprep.subr.mxu0 0.0
      %912 = vmatpush2.msra.mxu0 0.0
      %913 = vmatprep.subr.mxu0 0.0
      %914 = vmatpush2.msra.mxu0 0.0
      %915 = vmatprep.subr.mxu0 0.0
      %916 = vmatpush2.msra.mxu0 0.0
      %917 = vmatprep.subr.mxu0 0.0
      %918 = vmatpush2.msra.mxu0 0.0
      %919 = vmatprep.subr.mxu0 0.0
      %920 = vmatpush2.msra.mxu0 0.0
      %921 = vmatprep.subr.mxu0 0.0
      %922 = vmatpush2.msra.mxu0 0.0
      %923 = vmatprep.mubr.f32.mxu0 0.0
      %924 = vmatmul.mubr.f32.gmra.mxu0 %v848
      %v925 = vpop.f32.mrf.mxu0
      %v926 = vadd.f32 %v829, %v925
      %v927 = vpop.f32.mrf.mxu0
      %v928 = vadd.f32 %v829, %v927
      %929 = vmatprep.mubr.f32.mxu0 0.0
      %930 = vmatmul.mubr.f32.gmra.mxu0 %v851
      %v931 = vpop.f32.mrf.mxu0
      %v932 = vadd.f32 %v834, %v931
      %v933 = vpop.f32.mrf.mxu0
      %v934 = vadd.f32 %v834, %v933
      %935 = vmatprep.mubr.f32.mxu0 0.0
      %936 = vmatmul.mubr.f32.gmra.mxu0 %v854
      %v937 = vpop.f32.mrf.mxu0
      %v938 = vadd.f32 %v839, %v937
      %v939 = vpop.f32.mrf.mxu0
      %v940 = vadd.f32 %v839, %v939
      %941 = vmatprep.mubr.f32.mxu0 0.0
      %942 = vmatmul.mubr.f32.gmra.mxu0 %v857
      %v943 = vpop.f32.mrf.mxu0
      %v944 = vadd.f32 %v844, %v943
      %v945 = vpop.f32.mrf.mxu0
      %v946 = vadd.f32 %v844, %v945
      %947 = vdwg.mxu0
      %949 = vset.pattern.permute.xlu0 0
      %950 = vperm.xlu0 %949, %v502
      %v951 = vpop.permute.xlu0 %950
      %954 = vset.pattern.permute.xlu0 0
      %955 = vperm.xlu0 %954, %v503
      %v956 = vpop.permute.xlu0 %955
      %959 = vset.pattern.permute.xlu0 0
      %960 = vperm.xlu0 %959, %v504
      %v961 = vpop.permute.xlu0 %960
      %964 = vset.pattern.permute.xlu0 0
      %965 = vperm.xlu0 %964, %v505
      %v966 = vpop.permute.xlu0 %965
      %v969 = vsel %vm846, %v498, 0
      %v972 = vsel %vm846, %v499, 0
      %v975 = vsel %vm846, %v500, 0
      %v978 = vsel %vm846, %v501, 0
      %980 = vmatprep.subr.mxu0 0.0
      %981 = vmatpush1.msra.mxu0 0.0
      %982 = vmatprep.subr.mxu0 0.0
      %983 = vmatpush1.msra.mxu0 0.0
      %984 = vmatprep.subr.mxu0 0.0
      %985 = vmatpush1.msra.mxu0 0.0
      %986 = vmatprep.subr.mxu0 0.0
      %987 = vmatpush1.msra.mxu0 0.0
      %988 = vmatprep.subr.mxu0 0.0
      %989 = vmatpush1.msra.mxu0 0.0
      %990 = vmatprep.subr.mxu0 0.0
      %991 = vmatpush1.msra.mxu0 0.0
      %992 = vmatprep.subr.mxu0 0.0
      %993 = vmatpush1.msra.mxu0 0.0
      %994 = vmatprep.subr.mxu0 %v726
      %995 = vmatpush1.msra.mxu0 %v725
      %996 = vmatprep.subr.mxu0 %v712
      %997 = vmatpush1.msra.mxu0 %v711
      %998 = vmatprep.subr.mxu0 %v701
      %999 = vmatpush1.msra.mxu0 %v700
      %1000 = vmatprep.subr.mxu0 %v687
      %1001 = vmatpush1.msra.mxu0 %v686
      %1002 = vmatprep.subr.mxu0 %v673
      %1003 = vmatpush1.msra.mxu0 %v672
      %1004 = vmatprep.subr.mxu0 %v662
      %1005 = vmatpush1.msra.mxu0 %v661
      %1006 = vmatprep.subr.mxu0 %v648
      %1007 = vmatpush1.msra.mxu0 %v647
      %1008 = vmatprep.subr.mxu0 %v634
      %1009 = vmatpush1.msra.mxu0 %v633
      %1010 = vmatprep.subr.mxu0 %v542
      %1011 = vmatpush1.msra.mxu0 %v541
      %1012 = vmatprep.subr.mxu0 0.0
      %1013 = vmatpush2.msra.mxu0 0.0
      %1014 = vmatprep.subr.mxu0 0.0
      %1015 = vmatpush2.msra.mxu0 0.0
      %1016 = vmatprep.subr.mxu0 0.0
      %1017 = vmatpush2.msra.mxu0 0.0
      %1018 = vmatprep.subr.mxu0 0.0
      %1019 = vmatpush2.msra.mxu0 0.0
      %1020 = vmatprep.subr.mxu0 0.0
      %1021 = vmatpush2.msra.mxu0 0.0
      %1022 = vmatprep.subr.mxu0 0.0
      %1023 = vmatpush2.msra.mxu0 0.0
      %1024 = vmatprep.subr.mxu0 0.0
      %1025 = vmatpush2.msra.mxu0 0.0
      %1026 = vmatprep.subr.mxu0 0.0
      %1027 = vmatpush2.msra.mxu0 0.0
      %1028 = vmatprep.subr.mxu0 0.0
      %1029 = vmatpush2.msra.mxu0 0.0
      %1030 = vmatprep.subr.mxu0 0.0
      %1031 = vmatpush2.msra.mxu0 0.0
      %1032 = vmatprep.subr.mxu0 0.0
      %1033 = vmatpush2.msra.mxu0 0.0
      %1034 = vmatprep.subr.mxu0 0.0
      %1035 = vmatpush2.msra.mxu0 0.0
      %1036 = vmatprep.subr.mxu0 0.0
      %1037 = vmatpush2.msra.mxu0 0.0
      %1038 = vmatprep.subr.mxu0 0.0
      %1039 = vmatpush2.msra.mxu0 0.0
      %1040 = vmatprep.subr.mxu0 0.0
      %1041 = vmatpush2.msra.mxu0 0.0
      %1042 = vmatprep.subr.mxu0 0.0
      %1043 = vmatpush2.msra.mxu0 0.0
      %1044 = vmatprep.mubr.f32.mxu0 0.0
      %1045 = vmatmul.mubr.f32.gmra.mxu0 %v969
      %v1046 = vpop.f32.mrf.mxu0
      %v1047 = vadd.f32 %v951, %v1046
      %v1048 = vpop.f32.mrf.mxu0
      %v1049 = vadd.f32 %v951, %v1048
      %1050 = vmatprep.mubr.f32.mxu0 0.0
      %1051 = vmatmul.mubr.f32.gmra.mxu0 %v972
      %v1052 = vpop.f32.mrf.mxu0
      %v1053 = vadd.f32 %v956, %v1052
      %v1054 = vpop.f32.mrf.mxu0
      %v1055 = vadd.f32 %v956, %v1054
      %1056 = vmatprep.mubr.f32.mxu0 0.0
      %1057 = vmatmul.mubr.f32.gmra.mxu0 %v975
      %v1058 = vpop.f32.mrf.mxu0
      %v1059 = vadd.f32 %v961, %v1058
      %v1060 = vpop.f32.mrf.mxu0
      %v1061 = vadd.f32 %v961, %v1060
      %1062 = vmatprep.mubr.f32.mxu0 0.0
      %1063 = vmatmul.mubr.f32.gmra.mxu0 %v978
      %v1064 = vpop.f32.mrf.mxu0
      %v1065 = vadd.f32 %v966, %v1064
      %v1066 = vpop.f32.mrf.mxu0
      %v1067 = vadd.f32 %v966, %v1066
      %1068 = vdwg.mxu0
      %v1069 = vmul.f32 %v926, 0.5
      %v1070 = vmul.f32 %v928, 0.5
      %v1071 = vmul.f32 %v932, 0.5
      %v1072 = vmul.f32 %v934, 0.5
      %v1073 = vmul.f32 %v938, 0.5
      %v1074 = vmul.f32 %v940, 0.5
      %v1075 = vmul.f32 %v944, 0.5
      %v1076 = vmul.f32 %v946, 0.5
      %v1077 = vmul.f32 %v926, 0.70710677
      %v1078 = vmul.f32 %v928, 0.70710677
      %v1079 = vmul.f32 %v932, 0.70710677
      %v1080 = vmul.f32 %v934, 0.70710677
      %v1081 = vmul.f32 %v938, 0.70710677
      %v1082 = vmul.f32 %v940, 0.70710677
      %v1083 = vmul.f32 %v944, 0.70710677
      %v1084 = vmul.f32 %v946, 0.70710677
      %v1085 = verf.f32.pop %v1077
      %v1086 = verf.f32.pop %v1078
      %v1087 = verf.f32.pop %v1079
      %v1088 = verf.f32.pop %v1080
      %v1089 = verf.f32.pop %v1081
      %v1090 = verf.f32.pop %v1082
      %v1091 = verf.f32.pop %v1083
      %v1092 = verf.f32.pop %v1084
      %v1093 = vadd.f32 %v1085, 1.0
      %v1094 = vadd.f32 %v1086, 1.0
      %v1095 = vadd.f32 %v1087, 1.0
      %v1096 = vadd.f32 %v1088, 1.0
      %v1097 = vadd.f32 %v1089, 1.0
      %v1098 = vadd.f32 %v1090, 1.0
      %v1099 = vadd.f32 %v1091, 1.0
      %v1100 = vadd.f32 %v1092, 1.0
      %v1101 = vmul.f32 %v1069, %v1093
      %v1102 = vmul.f32 %v1070, %v1094
      %v1103 = vmul.f32 %v1071, %v1095
      %v1104 = vmul.f32 %v1072, %v1096
      %v1105 = vmul.f32 %v1073, %v1097
      %v1106 = vmul.f32 %v1074, %v1098
      %v1107 = vmul.f32 %v1075, %v1099
      %v1108 = vmul.f32 %v1076, %v1100
      %1110 = vset.pattern.permute.xlu0 0
      %1111 = vperm.xlu0 %1110, %v494
      %v1112 = vpop.permute.xlu0 %1111
      %1115 = vset.pattern.permute.xlu0 0
      %1116 = vperm.xlu0 %1115, %v495
      %v1117 = vpop.permute.xlu0 %1116
      %1120 = vset.pattern.permute.xlu0 0
      %1121 = vperm.xlu0 %1120, %v496
      %v1122 = vpop.permute.xlu0 %1121
      %1125 = vset.pattern.permute.xlu0 0
      %1126 = vperm.xlu0 %1125, %v497
      %v1127 = vpop.permute.xlu0 %1126
      %v1130 = vsel %vm598, %v490, 0
      %v1133 = vsel %vm598, %v491, 0
      %v1136 = vsel %vm598, %v492, 0
      %v1139 = vsel %vm598, %v493, 0
      %1141 = vmatprep.subr.mxu0 0.0
      %1142 = vmatpush1.msra.mxu0 0.0
      %1143 = vmatprep.subr.mxu0 0.0
      %1144 = vmatpush1.msra.mxu0 0.0
      %1145 = vmatprep.subr.mxu0 0.0
      %1146 = vmatpush1.msra.mxu0 0.0
      %1147 = vmatprep.subr.mxu0 0.0
      %1148 = vmatpush1.msra.mxu0 0.0
      %1149 = vmatprep.subr.mxu0 0.0
      %1150 = vmatpush1.msra.mxu0 0.0
      %1151 = vmatprep.subr.mxu0 0.0
      %1152 = vmatpush1.msra.mxu0 0.0
      %1153 = vmatprep.subr.mxu0 0.0
      %1154 = vmatpush1.msra.mxu0 0.0
      %1155 = vmatprep.subr.mxu0 0.0
      %1156 = vmatpush1.msra.mxu0 0.0
      %1157 = vmatprep.subr.mxu0 0.0
      %1158 = vmatpush1.msra.mxu0 0.0
      %1159 = vmatprep.subr.mxu0 0.0
      %1160 = vmatpush1.msra.mxu0 0.0
      %1161 = vmatprep.subr.mxu0 0.0
      %1162 = vmatpush1.msra.mxu0 0.0
      %1163 = vmatprep.subr.mxu0 0.0
      %1164 = vmatpush1.msra.mxu0 0.0
      %1165 = vmatprep.subr.mxu0 %v1108
      %1166 = vmatpush1.msra.mxu0 %v1107
      %1167 = vmatprep.subr.mxu0 %v1106
      %1168 = vmatpush1.msra.mxu0 %v1105
      %1169 = vmatprep.subr.mxu0 %v1104
      %1170 = vmatpush1.msra.mxu0 %v1103
      %1171 = vmatprep.subr.mxu0 %v1102
      %1172 = vmatpush1.msra.mxu0 %v1101
      %1173 = vmatprep.subr.mxu0 0.0
      %1174 = vmatpush2.msra.mxu0 0.0
      %1175 = vmatprep.subr.mxu0 0.0
      %1176 = vmatpush2.msra.mxu0 0.0
      %1177 = vmatprep.subr.mxu0 0.0
      %1178 = vmatpush2.msra.mxu0 0.0
      %1179 = vmatprep.subr.mxu0 0.0
      %1180 = vmatpush2.msra.mxu0 0.0
      %1181 = vmatprep.subr.mxu0 0.0
      %1182 = vmatpush2.msra.mxu0 0.0
      %1183 = vmatprep.subr.mxu0 0.0
      %1184 = vmatpush2.msra.mxu0 0.0
      %1185 = vmatprep.subr.mxu0 0.0
      %1186 = vmatpush2.msra.mxu0 0.0
      %1187 = vmatprep.subr.mxu0 0.0
      %1188 = vmatpush2.msra.mxu0 0.0
      %1189 = vmatprep.subr.mxu0 0.0
      %1190 = vmatpush2.msra.mxu0 0.0
      %1191 = vmatprep.subr.mxu0 0.0
      %1192 = vmatpush2.msra.mxu0 0.0
      %1193 = vmatprep.subr.mxu0 0.0
      %1194 = vmatpush2.msra.mxu0 0.0
      %1195 = vmatprep.subr.mxu0 0.0
      %1196 = vmatpush2.msra.mxu0 0.0
      %1197 = vmatprep.subr.mxu0 0.0
      %1198 = vmatpush2.msra.mxu0 0.0
      %1199 = vmatprep.subr.mxu0 0.0
      %1200 = vmatpush2.msra.mxu0 0.0
      %1201 = vmatprep.subr.mxu0 0.0
      %1202 = vmatpush2.msra.mxu0 0.0
      %1203 = vmatprep.subr.mxu0 0.0
      %1204 = vmatpush2.msra.mxu0 0.0
      %1205 = vmatprep.mubr.f32.mxu0 0.0
      %1206 = vmatmul.mubr.f32.gmra.mxu0 %v1130
      %v1207 = vpop.f32.mrf.mxu0
      %v1208 = vadd.f32 %v1112, %v1207
      %v1209 = vpop.f32.mrf.mxu0
      %v1210 = vadd.f32 %v1112, %v1209
      %1211 = vmatprep.mubr.f32.mxu0 0.0
      %1212 = vmatmul.mubr.f32.gmra.mxu0 %v1133
      %v1213 = vpop.f32.mrf.mxu0
      %v1214 = vadd.f32 %v1117, %v1213
      %v1215 = vpop.f32.mrf.mxu0
      %v1216 = vadd.f32 %v1117, %v1215
      %1217 = vmatprep.mubr.f32.mxu0 0.0
      %1218 = vmatmul.mubr.f32.gmra.mxu0 %v1136
      %v1219 = vpop.f32.mrf.mxu0
      %v1220 = vadd.f32 %v1122, %v1219
      %v1221 = vpop.f32.mrf.mxu0
      %v1222 = vadd.f32 %v1122, %v1221
      %1223 = vmatprep.mubr.f32.mxu0 0.0
      %1224 = vmatmul.mubr.f32.gmra.mxu0 %v1139
      %v1225 = vpop.f32.mrf.mxu0
      %v1226 = vadd.f32 %v1127, %v1225
      %v1227 = vpop.f32.mrf.mxu0
      %v1228 = vadd.f32 %v1127, %v1227
      %1229 = vdwg.mxu0
      %v1230 = vadd.f32 %v1208, %v1047
      %v1231 = vadd.f32 %v1210, %v1049
      %v1232 = vadd.f32 %v1214, %v1053
      %v1233 = vadd.f32 %v1216, %v1055
      %v1234 = vadd.f32 %v1220, %v1059
      %v1235 = vadd.f32 %v1222, %v1061
      %v1236 = vadd.f32 %v1226, %v1065
      %v1237 = vadd.f32 %v1228, %v1067
      %v1238 = vld [vmem:[%s7] sm:$0xff]
      %v1239 = vld [vmem:[%s7 + $0x8] sm:$0xff]
      %v1240 = vld [vmem:[%s7 + $0x10] sm:$0xff]
      %v1241 = vld [vmem:[%s7 + $0x18] sm:$0xff]
      %v1242 = vld [vmem:[%s7 + $0x20] sm:$0xff]
      %v1243 = vld [vmem:[%s7 + $0x28] sm:$0xff]
      %v1244 = vld [vmem:[%s7 + $0x30] sm:$0xff]
      %v1245 = vld [vmem:[%s7 + $0x38] sm:$0xff]
      %v1246 = vld [vmem:[%s7 + $0x40] sm:$0xff]
      %v1247 = vld [vmem:[%s7 + $0x48] sm:$0xff]
      %v1248 = vld [vmem:[%s7 + $0x50] sm:$0xff]
      %v1249 = vld [vmem:[%s7 + $0x58] sm:$0xff]
      %v1250 = vld [vmem:[%s8] sm:$0xff]
      %v1251 = vld [vmem:[%s8 + $0x8] sm:$0xff]
      %v1252 = vld [vmem:[%s8 + $0x10] sm:$0xff]
      %v1253 = vld [vmem:[%s8 + $0x18] sm:$0xff]
      %v1254 = vld [vmem:[%s9] sm:$0x7]
      %v1255 = vld [vmem:[%s10] sm:$0x7]
      %v1256 = vld [vmem:[%s11] sm:$0x77]
      %v1257 = vld [vmem:[%s11 + $0x8] sm:$0x7]
      %v1258 = vld [vmem:[%s12] sm:$0x7]
      %v1259 = vmul.f32 %v1230, 0.5
      %v1260 = vmul.f32 %v1231, 0.5
      %v1261 = vmul.f32 %v1232, 0.5
      %v1262 = vmul.f32 %v1233, 0.5
      %v1263 = vmul.f32 %v1234, 0.5
      %v1264 = vmul.f32 %v1235, 0.5
      %v1265 = vmul.f32 %v1236, 0.5
      %v1266 = vmul.f32 %v1237, 0.5
      %v1267 = vmul.f32 %v1230, 0.70710677
      %v1268 = vmul.f32 %v1231, 0.70710677
      %v1269 = vmul.f32 %v1232, 0.70710677
      %v1270 = vmul.f32 %v1233, 0.70710677
      %v1271 = vmul.f32 %v1234, 0.70710677
      %v1272 = vmul.f32 %v1235, 0.70710677
      %v1273 = vmul.f32 %v1236, 0.70710677
      %v1274 = vmul.f32 %v1237, 0.70710677
      %v1275 = verf.f32.pop %v1267
      %v1276 = verf.f32.pop %v1268
      %v1277 = verf.f32.pop %v1269
      %v1278 = verf.f32.pop %v1270
      %v1279 = verf.f32.pop %v1271
      %v1280 = verf.f32.pop %v1272
      %v1281 = verf.f32.pop %v1273
      %v1282 = verf.f32.pop %v1274
      %v1283 = vadd.f32 %v1275, 1.0
      %v1284 = vadd.f32 %v1276, 1.0
      %v1285 = vadd.f32 %v1277, 1.0
      %v1286 = vadd.f32 %v1278, 1.0
      %v1287 = vadd.f32 %v1279, 1.0
      %v1288 = vadd.f32 %v1280, 1.0
      %v1289 = vadd.f32 %v1281, 1.0
      %v1290 = vadd.f32 %v1282, 1.0
      %v1291 = vmul.f32 %v1259, %v1283
      %v1292 = vmul.f32 %v1260, %v1284
      %v1293 = vmul.f32 %v1261, %v1285
      %v1294 = vmul.f32 %v1262, %v1286
      %v1295 = vmul.f32 %v1263, %v1287
      %v1296 = vmul.f32 %v1264, %v1288
      %v1297 = vmul.f32 %v1265, %v1289
      %v1298 = vmul.f32 %v1266, %v1290
      %1315 = vrot.lane.b32.xlu0 %v1230, 17
      %v1316 = vpop.permute.xlu0 %1315
      %1317 = vrot.lane.b32.xlu0 %v1231, 17
      %v1318 = vpop.permute.xlu0 %1317
      %1319 = vrot.lane.b32.xlu0 %v1232, 17
      %v1320 = vpop.permute.xlu0 %1319
      %1321 = vrot.lane.b32.xlu0 %v1233, 17
      %v1322 = vpop.permute.xlu0 %1321
      %1323 = vrot.lane.b32.xlu0 %v1234, 17
      %v1324 = vpop.permute.xlu0 %1323
      %1325 = vrot.lane.b32.xlu0 %v1235, 17
      %v1326 = vpop.permute.xlu0 %1325
      %1327 = vrot.lane.b32.xlu0 %v1236, 17
      %v1328 = vpop.permute.xlu0 %1327
      %1329 = vrot.lane.b32.xlu0 %v1237, 17
      %v1330 = vpop.permute.xlu0 %1329
      %1331 = vrot.lane.b32.xlu0 %v1291, 17
      %v1332 = vpop.permute.xlu0 %1331
      %1333 = vrot.lane.b32.xlu0 %v1292, 17
      %v1334 = vpop.permute.xlu0 %1333
      %1335 = vrot.lane.b32.xlu0 %v1293, 17
      %v1336 = vpop.permute.xlu0 %1335
      %1337 = vrot.lane.b32.xlu0 %v1294, 17
      %v1338 = vpop.permute.xlu0 %1337
      %1339 = vrot.lane.b32.xlu0 %v1295, 17
      %v1340 = vpop.permute.xlu0 %1339
      %1341 = vrot.lane.b32.xlu0 %v1296, 17
      %v1342 = vpop.permute.xlu0 %1341
      %1343 = vrot.lane.b32.xlu0 %v1297, 17
      %v1344 = vpop.permute.xlu0 %1343
      %1345 = vrot.lane.b32.xlu0 %v1298, 17
      %v1346 = vpop.permute.xlu0 %1345
      %v1347 = vsel %vm528, %v1316, %v1318
      %v1348 = vsel %vm528, %v1320, %v1322
      %v1349 = vsel %vm528, %v1324, %v1326
      %v1350 = vsel %vm528, %v1328, %v1330
      %v1351 = vsel %vm528, %v1332, %v1334
      %v1352 = vsel %vm528, %v1336, %v1338
      %v1353 = vsel %vm528, %v1340, %v1342
      %v1354 = vsel %vm528, %v1344, %v1346
      %v1379 = vsel %vm528, 0.0, %v1316
      %v1380 = vsel %vm528, 0.0, %v1320
      %v1381 = vsel %vm528, 0.0, %v1324
      %v1382 = vsel %vm528, 0.0, %v1328
      %v1383 = vsel %vm528, 0.0, %v1332
      %v1384 = vsel %vm528, 0.0, %v1336
      %v1385 = vsel %vm528, 0.0, %v1340
      %v1386 = vsel %vm528, 0.0, %v1344
      %v1387 = vsel %vm528, %v1318, 0.0
      %v1388 = vsel %vm528, %v1322, 0.0
      %v1389 = vsel %vm528, %v1326, 0.0
      %v1390 = vsel %vm528, %v1330, 0.0
      %v1391 = vsel %vm528, %v1334, 0.0
      %v1392 = vsel %vm528, %v1338, 0.0
      %v1393 = vsel %vm528, %v1342, 0.0
      %v1394 = vsel %vm528, %v1346, 0.0
      %v1395 = vmul.f32 %v1379, %v472
      %v1396 = vmul.f32 %v1347, %v473
      %v1397 = vmul.f32 %v1380, %v472
      %v1398 = vmul.f32 %v1348, %v473
      %v1399 = vmul.f32 %v1381, %v472
      %v1400 = vmul.f32 %v1349, %v473
      %v1401 = vmul.f32 %v1382, %v472
      %v1402 = vmul.f32 %v1350, %v473
      %v1403 = vmul.f32 %v1383, %v472
      %v1404 = vmul.f32 %v1351, %v473
      %v1405 = vmul.f32 %v1384, %v472
      %v1406 = vmul.f32 %v1352, %v473
      %v1407 = vmul.f32 %v1385, %v472
      %v1408 = vmul.f32 %v1353, %v473
      %v1409 = vmul.f32 %v1386, %v472
      %v1410 = vmul.f32 %v1354, %v473
      %v1411 = vmul.f32 %v1379, %v548
      %v1412 = vmul.f32 %v1347, %v552
      %v1413 = vmul.f32 %v1387, %v550
      %v1414 = vmul.f32 %v1380, %v548
      %v1415 = vmul.f32 %v1348, %v552
      %v1416 = vmul.f32 %v1388, %v550
      %v1417 = vmul.f32 %v1381, %v548
      %v1418 = vmul.f32 %v1349, %v552
      %v1419 = vmul.f32 %v1389, %v550
      %v1420 = vmul.f32 %v1382, %v548
      %v1421 = vmul.f32 %v1350, %v552
      %v1422 = vmul.f32 %v1390, %v550
      %v1423 = vmul.f32 %v1383, %v548
      %v1424 = vmul.f32 %v1351, %v552
      %v1425 = vmul.f32 %v1391, %v550
      %v1426 = vmul.f32 %v1384, %v548
      %v1427 = vmul.f32 %v1352, %v552
      %v1428 = vmul.f32 %v1392, %v550
      %v1429 = vmul.f32 %v1385, %v548
      %v1430 = vmul.f32 %v1353, %v552
      %v1431 = vmul.f32 %v1393, %v550
      %v1432 = vmul.f32 %v1386, %v548
      %v1433 = vmul.f32 %v1354, %v552
      %v1434 = vmul.f32 %v1394, %v550
      %v1435 = vmul.f32 %v1379, %v565
      %v1436 = vmul.f32 %v1347, %v569
      %v1437 = vmul.f32 %v1387, %v567
      %v1438 = vmul.f32 %v1380, %v565
      %v1439 = vmul.f32 %v1348, %v569
      %v1440 = vmul.f32 %v1388, %v567
      %v1441 = vmul.f32 %v1381, %v565
      %v1442 = vmul.f32 %v1349, %v569
      %v1443 = vmul.f32 %v1389, %v567
      %v1444 = vmul.f32 %v1382, %v565
      %v1445 = vmul.f32 %v1350, %v569
      %v1446 = vmul.f32 %v1390, %v567
      %v1447 = vmul.f32 %v1383, %v565
      %v1448 = vmul.f32 %v1351, %v569
      %v1449 = vmul.f32 %v1391, %v567
      %v1450 = vmul.f32 %v1384, %v565
      %v1451 = vmul.f32 %v1352, %v569
      %v1452 = vmul.f32 %v1392, %v567
      %v1453 = vmul.f32 %v1385, %v565
      %v1454 = vmul.f32 %v1353, %v569
      %v1455 = vmul.f32 %v1393, %v567
      %v1456 = vmul.f32 %v1386, %v565
      %v1457 = vmul.f32 %v1354, %v569
      %v1458 = vmul.f32 %v1394, %v567
      %v1459 = vmul.f32 %v1379, %v580
      %v1460 = vmul.f32 %v1347, %v584
      %v1461 = vmul.f32 %v1387, %v582
      %v1462 = vmul.f32 %v1380, %v580
      %v1463 = vmul.f32 %v1348, %v584
      %v1464 = vmul.f32 %v1388, %v582
      %v1465 = vmul.f32 %v1381, %v580
      %v1466 = vmul.f32 %v1349, %v584
      %v1467 = vmul.f32 %v1389, %v582
      %v1468 = vmul.f32 %v1382, %v580
      %v1469 = vmul.f32 %v1350, %v584
      %v1470 = vmul.f32 %v1390, %v582
      %v1471 = vmul.f32 %v1383, %v580
      %v1472 = vmul.f32 %v1351, %v584
      %v1473 = vmul.f32 %v1391, %v582
      %v1474 = vmul.f32 %v1384, %v580
      %v1475 = vmul.f32 %v1352, %v584
      %v1476 = vmul.f32 %v1392, %v582
      %v1477 = vmul.f32 %v1385, %v580
      %v1478 = vmul.f32 %v1353, %v584
      %v1479 = vmul.f32 %v1393, %v582
      %v1480 = vmul.f32 %v1386, %v580
      %v1481 = vmul.f32 %v1354, %v584
      %v1482 = vmul.f32 %v1394, %v582
      %v1483 = vmul.f32 %v1379, %v595
      %v1484 = vmul.f32 %v1347, %v599
      %v1485 = vmul.f32 %v1387, %v597
      %v1486 = vmul.f32 %v1380, %v595
      %v1487 = vmul.f32 %v1348, %v599
      %v1488 = vmul.f32 %v1388, %v597
      %v1489 = vmul.f32 %v1381, %v595
      %v1490 = vmul.f32 %v1349, %v599
      %v1491 = vmul.f32 %v1389, %v597
      %v1492 = vmul.f32 %v1382, %v595
      %v1493 = vmul.f32 %v1350, %v599
      %v1494 = vmul.f32 %v1390, %v597
      %v1495 = vmul.f32 %v1383, %v595
      %v1496 = vmul.f32 %v1351, %v599
      %v1497 = vmul.f32 %v1391, %v597
      %v1498 = vmul.f32 %v1384, %v595
      %v1499 = vmul.f32 %v1352, %v599
      %v1500 = vmul.f32 %v1392, %v597
      %v1501 = vmul.f32 %v1385, %v595
      %v1502 = vmul.f32 %v1353, %v599
      %v1503 = vmul.f32 %v1393, %v597
      %v1504 = vmul.f32 %v1386, %v595
      %v1505 = vmul.f32 %v1354, %v599
      %v1506 = vmul.f32 %v1394, %v597
      %v1507 = vmul.f32 %v1379, %v610
      %v1508 = vmul.f32 %v1347, %v614
      %v1509 = vmul.f32 %v1387, %v612
      %v1510 = vmul.f32 %v1380, %v610
      %v1511 = vmul.f32 %v1348, %v614
      %v1512 = vmul.f32 %v1388, %v612
      %v1513 = vmul.f32 %v1381, %v610
      %v1514 = vmul.f32 %v1349, %v614
      %v1515 = vmul.f32 %v1389, %v612
      %v1516 = vmul.f32 %v1382, %v610
      %v1517 = vmul.f32 %v1350, %v614
      %v1518 = vmul.f32 %v1390, %v612
      %v1519 = vmul.f32 %v1383, %v610
      %v1520 = vmul.f32 %v1351, %v614
      %v1521 = vmul.f32 %v1391, %v612
      %v1522 = vmul.f32 %v1384, %v610
      %v1523 = vmul.f32 %v1352, %v614
      %v1524 = vmul.f32 %v1392, %v612
      %v1525 = vmul.f32 %v1385, %v610
      %v1526 = vmul.f32 %v1353, %v614
      %v1527 = vmul.f32 %v1393, %v612
      %v1528 = vmul.f32 %v1386, %v610
      %v1529 = vmul.f32 %v1354, %v614
      %v1530 = vmul.f32 %v1394, %v612
      %1539 = vrot.lane.b32.xlu0 %v1379, 127
      %v1540 = vpop.permute.xlu0 %1539
      %1541 = vrot.lane.b32.xlu0 %v1347, 127
      %v1542 = vpop.permute.xlu0 %1541
      %1543 = vrot.lane.b32.xlu0 %v1387, 127
      %v1544 = vpop.permute.xlu0 %1543
      %1545 = vrot.lane.b32.xlu0 %v1380, 127
      %v1546 = vpop.permute.xlu0 %1545
      %1547 = vrot.lane.b32.xlu0 %v1348, 127
      %v1548 = vpop.permute.xlu0 %1547
      %1549 = vrot.lane.b32.xlu0 %v1388, 127
      %v1550 = vpop.permute.xlu0 %1549
      %1551 = vrot.lane.b32.xlu0 %v1381, 127
      %v1552 = vpop.permute.xlu0 %1551
      %1553 = vrot.lane.b32.xlu0 %v1349, 127
      %v1554 = vpop.permute.xlu0 %1553
      %1555 = vrot.lane.b32.xlu0 %v1389, 127
      %v1556 = vpop.permute.xlu0 %1555
      %1557 = vrot.lane.b32.xlu0 %v1382, 127
      %v1558 = vpop.permute.xlu0 %1557
      %1559 = vrot.lane.b32.xlu0 %v1350, 127
      %v1560 = vpop.permute.xlu0 %1559
      %1561 = vrot.lane.b32.xlu0 %v1390, 127
      %v1562 = vpop.permute.xlu0 %1561
      %v1563 = vsel %vm632, %v1540, %v1542
      %v1564 = vsel %vm632, %v1542, %v1544
      %v1565 = vsel %vm632, %v1546, %v1548
      %v1566 = vsel %vm632, %v1548, %v1550
      %v1567 = vsel %vm632, %v1552, %v1554
      %v1568 = vsel %vm632, %v1554, %v1556
      %v1569 = vsel %vm632, %v1558, %v1560
      %v1570 = vsel %vm632, %v1560, %v1562
      %1591 = vrot.lane.b32.xlu0 %v1411, 126
      %v1592 = vpop.permute.xlu0 %1591
      %1593 = vrot.lane.b32.xlu0 %v1412, 126
      %v1594 = vpop.permute.xlu0 %1593
      %1595 = vrot.lane.b32.xlu0 %v1413, 126
      %v1596 = vpop.permute.xlu0 %1595
      %1597 = vrot.lane.b32.xlu0 %v1414, 126
      %v1598 = vpop.permute.xlu0 %1597
      %1599 = vrot.lane.b32.xlu0 %v1415, 126
      %v1600 = vpop.permute.xlu0 %1599
      %1601 = vrot.lane.b32.xlu0 %v1416, 126
      %v1602 = vpop.permute.xlu0 %1601
      %1603 = vrot.lane.b32.xlu0 %v1417, 126
      %v1604 = vpop.permute.xlu0 %1603
      %1605 = vrot.lane.b32.xlu0 %v1418, 126
      %v1606 = vpop.permute.xlu0 %1605
      %1607 = vrot.lane.b32.xlu0 %v1419, 126
      %v1608 = vpop.permute.xlu0 %1607
      %1609 = vrot.lane.b32.xlu0 %v1420, 126
      %v1610 = vpop.permute.xlu0 %1609
      %1611 = vrot.lane.b32.xlu0 %v1421, 126
      %v1612 = vpop.permute.xlu0 %1611
      %1613 = vrot.lane.b32.xlu0 %v1422, 126
      %v1614 = vpop.permute.xlu0 %1613
      %v1615 = vsel %vm646, %v1592, %v1594
      %v1616 = vsel %vm646, %v1594, %v1596
      %v1617 = vsel %vm646, %v1598, %v1600
      %v1618 = vsel %vm646, %v1600, %v1602
      %v1619 = vsel %vm646, %v1604, %v1606
      %v1620 = vsel %vm646, %v1606, %v1608
      %v1621 = vsel %vm646, %v1610, %v1612
      %v1622 = vsel %vm646, %v1612, %v1614
      %1643 = vrot.lane.b32.xlu0 %v1435, 112
      %v1644 = vpop.permute.xlu0 %1643
      %1645 = vrot.lane.b32.xlu0 %v1436, 112
      %v1646 = vpop.permute.xlu0 %1645
      %1647 = vrot.lane.b32.xlu0 %v1437, 112
      %v1648 = vpop.permute.xlu0 %1647
      %1649 = vrot.lane.b32.xlu0 %v1438, 112
      %v1650 = vpop.permute.xlu0 %1649
      %1651 = vrot.lane.b32.xlu0 %v1439, 112
      %v1652 = vpop.permute.xlu0 %1651
      %1653 = vrot.lane.b32.xlu0 %v1440, 112
      %v1654 = vpop.permute.xlu0 %1653
      %1655 = vrot.lane.b32.xlu0 %v1441, 112
      %v1656 = vpop.permute.xlu0 %1655
      %1657 = vrot.lane.b32.xlu0 %v1442, 112
      %v1658 = vpop.permute.xlu0 %1657
      %1659 = vrot.lane.b32.xlu0 %v1443, 112
      %v1660 = vpop.permute.xlu0 %1659
      %1661 = vrot.lane.b32.xlu0 %v1444, 112
      %v1662 = vpop.permute.xlu0 %1661
      %1663 = vrot.lane.b32.xlu0 %v1445, 112
      %v1664 = vpop.permute.xlu0 %1663
      %1665 = vrot.lane.b32.xlu0 %v1446, 112
      %v1666 = vpop.permute.xlu0 %1665
      %v1667 = vsel %vm660, %v1644, %v1646
      %v1668 = vsel %vm660, %v1646, %v1648
      %v1669 = vsel %vm660, %v1650, %v1652
      %v1670 = vsel %vm660, %v1652, %v1654
      %v1671 = vsel %vm660, %v1656, %v1658
      %v1672 = vsel %vm660, %v1658, %v1660
      %v1673 = vsel %vm660, %v1662, %v1664
      %v1674 = vsel %vm660, %v1664, %v1666
      %1683 = vrot.lane.b32.xlu0 %v1379, 111
      %v1684 = vpop.permute.xlu0 %1683
      %1685 = vrot.lane.b32.xlu0 %v1347, 111
      %v1686 = vpop.permute.xlu0 %1685
      %1687 = vrot.lane.b32.xlu0 %v1387, 111
      %v1688 = vpop.permute.xlu0 %1687
      %1689 = vrot.lane.b32.xlu0 %v1380, 111
      %v1690 = vpop.permute.xlu0 %1689
      %1691 = vrot.lane.b32.xlu0 %v1348, 111
      %v1692 = vpop.permute.xlu0 %1691
      %1693 = vrot.lane.b32.xlu0 %v1388, 111
      %v1694 = vpop.permute.xlu0 %1693
      %1695 = vrot.lane.b32.xlu0 %v1381, 111
      %v1696 = vpop.permute.xlu0 %1695
      %1697 = vrot.lane.b32.xlu0 %v1349, 111
      %v1698 = vpop.permute.xlu0 %1697
      %1699 = vrot.lane.b32.xlu0 %v1389, 111
      %v1700 = vpop.permute.xlu0 %1699
      %1701 = vrot.lane.b32.xlu0 %v1382, 111
      %v1702 = vpop.permute.xlu0 %1701
      %1703 = vrot.lane.b32.xlu0 %v1350, 111
      %v1704 = vpop.permute.xlu0 %1703
      %1705 = vrot.lane.b32.xlu0 %v1390, 111
      %v1706 = vpop.permute.xlu0 %1705
      %v1707 = vsel %vm671, %v1684, %v1686
      %v1708 = vsel %vm671, %v1686, %v1688
      %v1709 = vsel %vm671, %v1690, %v1692
      %v1710 = vsel %vm671, %v1692, %v1694
      %v1711 = vsel %vm671, %v1696, %v1698
      %v1712 = vsel %vm671, %v1698, %v1700
      %v1713 = vsel %vm671, %v1702, %v1704
      %v1714 = vsel %vm671, %v1704, %v1706
      %1735 = vrot.lane.b32.xlu0 %v1459, 110
      %v1736 = vpop.permute.xlu0 %1735
      %1737 = vrot.lane.b32.xlu0 %v1460, 110
      %v1738 = vpop.permute.xlu0 %1737
      %1739 = vrot.lane.b32.xlu0 %v1461, 110
      %v1740 = vpop.permute.xlu0 %1739
      %1741 = vrot.lane.b32.xlu0 %v1462, 110
      %v1742 = vpop.permute.xlu0 %1741
      %1743 = vrot.lane.b32.xlu0 %v1463, 110
      %v1744 = vpop.permute.xlu0 %1743
      %1745 = vrot.lane.b32.xlu0 %v1464, 110
      %v1746 = vpop.permute.xlu0 %1745
      %1747 = vrot.lane.b32.xlu0 %v1465, 110
      %v1748 = vpop.permute.xlu0 %1747
      %1749 = vrot.lane.b32.xlu0 %v1466, 110
      %v1750 = vpop.permute.xlu0 %1749
      %1751 = vrot.lane.b32.xlu0 %v1467, 110
      %v1752 = vpop.permute.xlu0 %1751
      %1753 = vrot.lane.b32.xlu0 %v1468, 110
      %v1754 = vpop.permute.xlu0 %1753
      %1755 = vrot.lane.b32.xlu0 %v1469, 110
      %v1756 = vpop.permute.xlu0 %1755
      %1757 = vrot.lane.b32.xlu0 %v1470, 110
      %v1758 = vpop.permute.xlu0 %1757
      %v1759 = vsel %vm685, %v1736, %v1738
      %v1760 = vsel %vm685, %v1738, %v1740
      %v1761 = vsel %vm685, %v1742, %v1744
      %v1762 = vsel %vm685, %v1744, %v1746
      %v1763 = vsel %vm685, %v1748, %v1750
      %v1764 = vsel %vm685, %v1750, %v1752
      %v1765 = vsel %vm685, %v1754, %v1756
      %v1766 = vsel %vm685, %v1756, %v1758
      %1787 = vrot.lane.b32.xlu0 %v1483, 96
      %v1788 = vpop.permute.xlu0 %1787
      %1789 = vrot.lane.b32.xlu0 %v1484, 96
      %v1790 = vpop.permute.xlu0 %1789
      %1791 = vrot.lane.b32.xlu0 %v1485, 96
      %v1792 = vpop.permute.xlu0 %1791
      %1793 = vrot.lane.b32.xlu0 %v1486, 96
      %v1794 = vpop.permute.xlu0 %1793
      %1795 = vrot.lane.b32.xlu0 %v1487, 96
      %v1796 = vpop.permute.xlu0 %1795
      %1797 = vrot.lane.b32.xlu0 %v1488, 96
      %v1798 = vpop.permute.xlu0 %1797
      %1799 = vrot.lane.b32.xlu0 %v1489, 96
      %v1800 = vpop.permute.xlu0 %1799
      %1801 = vrot.lane.b32.xlu0 %v1490, 96
      %v1802 = vpop.permute.xlu0 %1801
      %1803 = vrot.lane.b32.xlu0 %v1491, 96
      %v1804 = vpop.permute.xlu0 %1803
      %1805 = vrot.lane.b32.xlu0 %v1492, 96
      %v1806 = vpop.permute.xlu0 %1805
      %1807 = vrot.lane.b32.xlu0 %v1493, 96
      %v1808 = vpop.permute.xlu0 %1807
      %1809 = vrot.lane.b32.xlu0 %v1494, 96
      %v1810 = vpop.permute.xlu0 %1809
      %v1811 = vsel %vm699, %v1788, %v1790
      %v1812 = vsel %vm699, %v1790, %v1792
      %v1813 = vsel %vm699, %v1794, %v1796
      %v1814 = vsel %vm699, %v1796, %v1798
      %v1815 = vsel %vm699, %v1800, %v1802
      %v1816 = vsel %vm699, %v1802, %v1804
      %v1817 = vsel %vm699, %v1806, %v1808
      %v1818 = vsel %vm699, %v1808, %v1810
      %1827 = vrot.lane.b32.xlu0 %v1379, 95
      %v1828 = vpop.permute.xlu0 %1827
      %1829 = vrot.lane.b32.xlu0 %v1347, 95
      %v1830 = vpop.permute.xlu0 %1829
      %1831 = vrot.lane.b32.xlu0 %v1387, 95
      %v1832 = vpop.permute.xlu0 %1831
      %1833 = vrot.lane.b32.xlu0 %v1380, 95
      %v1834 = vpop.permute.xlu0 %1833
      %1835 = vrot.lane.b32.xlu0 %v1348, 95
      %v1836 = vpop.permute.xlu0 %1835
      %1837 = vrot.lane.b32.xlu0 %v1388, 95
      %v1838 = vpop.permute.xlu0 %1837
      %1839 = vrot.lane.b32.xlu0 %v1381, 95
      %v1840 = vpop.permute.xlu0 %1839
      %1841 = vrot.lane.b32.xlu0 %v1349, 95
      %v1842 = vpop.permute.xlu0 %1841
      %1843 = vrot.lane.b32.xlu0 %v1389, 95
      %v1844 = vpop.permute.xlu0 %1843
      %1845 = vrot.lane.b32.xlu0 %v1382, 95
      %v1846 = vpop.permute.xlu0 %1845
      %1847 = vrot.lane.b32.xlu0 %v1350, 95
      %v1848 = vpop.permute.xlu0 %1847
      %1849 = vrot.lane.b32.xlu0 %v1390, 95
      %v1850 = vpop.permute.xlu0 %1849
      %v1851 = vsel %vm710, %v1828, %v1830
      %v1852 = vsel %vm710, %v1830, %v1832
      %v1853 = vsel %vm710, %v1834, %v1836
      %v1854 = vsel %vm710, %v1836, %v1838
      %v1855 = vsel %vm710, %v1840, %v1842
      %v1856 = vsel %vm710, %v1842, %v1844
      %v1857 = vsel %vm710, %v1846, %v1848
      %v1858 = vsel %vm710, %v1848, %v1850
      %1879 = vrot.lane.b32.xlu0 %v1507, 94
      %v1880 = vpop.permute.xlu0 %1879
      %1881 = vrot.lane.b32.xlu0 %v1508, 94
      %v1882 = vpop.permute.xlu0 %1881
      %1883 = vrot.lane.b32.xlu0 %v1509, 94
      %v1884 = vpop.permute.xlu0 %1883
      %1885 = vrot.lane.b32.xlu0 %v1510, 94
      %v1886 = vpop.permute.xlu0 %1885
      %1887 = vrot.lane.b32.xlu0 %v1511, 94
      %v1888 = vpop.permute.xlu0 %1887
      %1889 = vrot.lane.b32.xlu0 %v1512, 94
      %v1890 = vpop.permute.xlu0 %1889
      %1891 = vrot.lane.b32.xlu0 %v1513, 94
      %v1892 = vpop.permute.xlu0 %1891
      %1893 = vrot.lane.b32.xlu0 %v1514, 94
      %v1894 = vpop.permute.xlu0 %1893
      %1895 = vrot.lane.b32.xlu0 %v1515, 94
      %v1896 = vpop.permute.xlu0 %1895
      %1897 = vrot.lane.b32.xlu0 %v1516, 94
      %v1898 = vpop.permute.xlu0 %1897
      %1899 = vrot.lane.b32.xlu0 %v1517, 94
      %v1900 = vpop.permute.xlu0 %1899
      %1901 = vrot.lane.b32.xlu0 %v1518, 94
      %v1902 = vpop.permute.xlu0 %1901
      %v1903 = vsel %vm724, %v1880, %v1882
      %v1904 = vsel %vm724, %v1882, %v1884
      %v1905 = vsel %vm724, %v1886, %v1888
      %v1906 = vsel %vm724, %v1888, %v1890
      %v1907 = vsel %vm724, %v1892, %v1894
      %v1908 = vsel %vm724, %v1894, %v1896
      %v1909 = vsel %vm724, %v1898, %v1900
      %v1910 = vsel %vm724, %v1900, %v1902
      %1927 = vrot.lane.b32.xlu0 %v1383, 127
      %v1928 = vpop.permute.xlu0 %1927
      %1929 = vrot.lane.b32.xlu0 %v1351, 127
      %v1930 = vpop.permute.xlu0 %1929
      %1931 = vrot.lane.b32.xlu0 %v1391, 127
      %v1932 = vpop.permute.xlu0 %1931
      %1933 = vrot.lane.b32.xlu0 %v1384, 127
      %v1934 = vpop.permute.xlu0 %1933
      %1935 = vrot.lane.b32.xlu0 %v1352, 127
      %v1936 = vpop.permute.xlu0 %1935
      %1937 = vrot.lane.b32.xlu0 %v1392, 127
      %v1938 = vpop.permute.xlu0 %1937
      %1939 = vrot.lane.b32.xlu0 %v1385, 127
      %v1940 = vpop.permute.xlu0 %1939
      %1941 = vrot.lane.b32.xlu0 %v1353, 127
      %v1942 = vpop.permute.xlu0 %1941
      %1943 = vrot.lane.b32.xlu0 %v1393, 127
      %v1944 = vpop.permute.xlu0 %1943
      %1945 = vrot.lane.b32.xlu0 %v1386, 127
      %v1946 = vpop.permute.xlu0 %1945
      %1947 = vrot.lane.b32.xlu0 %v1354, 127
      %v1948 = vpop.permute.xlu0 %1947
      %1949 = vrot.lane.b32.xlu0 %v1394, 127
      %v1950 = vpop.permute.xlu0 %1949
      %v1951 = vsel %vm632, %v1928, %v1930
      %v1952 = vsel %vm632, %v1930, %v1932
      %v1953 = vsel %vm632, %v1934, %v1936
      %v1954 = vsel %vm632, %v1936, %v1938
      %v1955 = vsel %vm632, %v1940, %v1942
      %v1956 = vsel %vm632, %v1942, %v1944
      %v1957 = vsel %vm632, %v1946, %v1948
      %v1958 = vsel %vm632, %v1948, %v1950
      %1979 = vrot.lane.b32.xlu0 %v1423, 126
      %v1980 = vpop.permute.xlu0 %1979
      %1981 = vrot.lane.b32.xlu0 %v1424, 126
      %v1982 = vpop.permute.xlu0 %1981
      %1983 = vrot.lane.b32.xlu0 %v1425, 126
      %v1984 = vpop.permute.xlu0 %1983
      %1985 = vrot.lane.b32.xlu0 %v1426, 126
      %v1986 = vpop.permute.xlu0 %1985
      %1987 = vrot.lane.b32.xlu0 %v1427, 126
      %v1988 = vpop.permute.xlu0 %1987
      %1989 = vrot.lane.b32.xlu0 %v1428, 126
      %v1990 = vpop.permute.xlu0 %1989
      %1991 = vrot.lane.b32.xlu0 %v1429, 126
      %v1992 = vpop.permute.xlu0 %1991
      %1993 = vrot.lane.b32.xlu0 %v1430, 126
      %v1994 = vpop.permute.xlu0 %1993
      %1995 = vrot.lane.b32.xlu0 %v1431, 126
      %v1996 = vpop.permute.xlu0 %1995
      %1997 = vrot.lane.b32.xlu0 %v1432, 126
      %v1998 = vpop.permute.xlu0 %1997
      %1999 = vrot.lane.b32.xlu0 %v1433, 126
      %v2000 = vpop.permute.xlu0 %1999
      %2001 = vrot.lane.b32.xlu0 %v1434, 126
      %v2002 = vpop.permute.xlu0 %2001
      %v2003 = vsel %vm646, %v1980, %v1982
      %v2004 = vsel %vm646, %v1982, %v1984
      %v2005 = vsel %vm646, %v1986, %v1988
      %v2006 = vsel %vm646, %v1988, %v1990
      %v2007 = vsel %vm646, %v1992, %v1994
      %v2008 = vsel %vm646, %v1994, %v1996
      %v2009 = vsel %vm646, %v1998, %v2000
      %v2010 = vsel %vm646, %v2000, %v2002
      %2031 = vrot.lane.b32.xlu0 %v1447, 112
      %v2032 = vpop.permute.xlu0 %2031
      %2033 = vrot.lane.b32.xlu0 %v1448, 112
      %v2034 = vpop.permute.xlu0 %2033
      %2035 = vrot.lane.b32.xlu0 %v1449, 112
      %v2036 = vpop.permute.xlu0 %2035
      %2037 = vrot.lane.b32.xlu0 %v1450, 112
      %v2038 = vpop.permute.xlu0 %2037
      %2039 = vrot.lane.b32.xlu0 %v1451, 112
      %v2040 = vpop.permute.xlu0 %2039
      %2041 = vrot.lane.b32.xlu0 %v1452, 112
      %v2042 = vpop.permute.xlu0 %2041
      %2043 = vrot.lane.b32.xlu0 %v1453, 112
      %v2044 = vpop.permute.xlu0 %2043
      %2045 = vrot.lane.b32.xlu0 %v1454, 112
      %v2046 = vpop.permute.xlu0 %2045
      %2047 = vrot.lane.b32.xlu0 %v1455, 112
      %v2048 = vpop.permute.xlu0 %2047
      %2049 = vrot.lane.b32.xlu0 %v1456, 112
      %v2050 = vpop.permute.xlu0 %2049
      %2051 = vrot.lane.b32.xlu0 %v1457, 112
      %v2052 = vpop.permute.xlu0 %2051
      %2053 = vrot.lane.b32.xlu0 %v1458, 112
      %v2054 = vpop.permute.xlu0 %2053
      %v2055 = vsel %vm660, %v2032, %v2034
      %v2056 = vsel %vm660, %v2034, %v2036
      %v2057 = vsel %vm660, %v2038, %v2040
      %v2058 = vsel %vm660, %v2040, %v2042
      %v2059 = vsel %vm660, %v2044, %v2046
      %v2060 = vsel %vm660, %v2046, %v2048
      %v2061 = vsel %vm660, %v2050, %v2052
      %v2062 = vsel %vm660, %v2052, %v2054
      %2071 = vrot.lane.b32.xlu0 %v1383, 111
      %v2072 = vpop.permute.xlu0 %2071
      %2073 = vrot.lane.b32.xlu0 %v1351, 111
      %v2074 = vpop.permute.xlu0 %2073
      %2075 = vrot.lane.b32.xlu0 %v1391, 111
      %v2076 = vpop.permute.xlu0 %2075
      %2077 = vrot.lane.b32.xlu0 %v1384, 111
      %v2078 = vpop.permute.xlu0 %2077
      %2079 = vrot.lane.b32.xlu0 %v1352, 111
      %v2080 = vpop.permute.xlu0 %2079
      %2081 = vrot.lane.b32.xlu0 %v1392, 111
      %v2082 = vpop.permute.xlu0 %2081
      %2083 = vrot.lane.b32.xlu0 %v1385, 111
      %v2084 = vpop.permute.xlu0 %2083
      %2085 = vrot.lane.b32.xlu0 %v1353, 111
      %v2086 = vpop.permute.xlu0 %2085
      %2087 = vrot.lane.b32.xlu0 %v1393, 111
      %v2088 = vpop.permute.xlu0 %2087
      %2089 = vrot.lane.b32.xlu0 %v1386, 111
      %v2090 = vpop.permute.xlu0 %2089
      %2091 = vrot.lane.b32.xlu0 %v1354, 111
      %v2092 = vpop.permute.xlu0 %2091
      %2093 = vrot.lane.b32.xlu0 %v1394, 111
      %v2094 = vpop.permute.xlu0 %2093
      %v2095 = vsel %vm671, %v2072, %v2074
      %v2096 = vsel %vm671, %v2074, %v2076
      %v2097 = vsel %vm671, %v2078, %v2080
      %v2098 = vsel %vm671, %v2080, %v2082
      %v2099 = vsel %vm671, %v2084, %v2086
      %v2100 = vsel %vm671, %v2086, %v2088
      %v2101 = vsel %vm671, %v2090, %v2092
      %v2102 = vsel %vm671, %v2092, %v2094
      %2123 = vrot.lane.b32.xlu0 %v1471, 110
      %v2124 = vpop.permute.xlu0 %2123
      %2125 = vrot.lane.b32.xlu0 %v1472, 110
      %v2126 = vpop.permute.xlu0 %2125
      %2127 = vrot.lane.b32.xlu0 %v1473, 110
      %v2128 = vpop.permute.xlu0 %2127
      %2129 = vrot.lane.b32.xlu0 %v1474, 110
      %v2130 = vpop.permute.xlu0 %2129
      %2131 = vrot.lane.b32.xlu0 %v1475, 110
      %v2132 = vpop.permute.xlu0 %2131
      %2133 = vrot.lane.b32.xlu0 %v1476, 110
      %v2134 = vpop.permute.xlu0 %2133
      %2135 = vrot.lane.b32.xlu0 %v1477, 110
      %v2136 = vpop.permute.xlu0 %2135
      %2137 = vrot.lane.b32.xlu0 %v1478, 110
      %v2138 = vpop.permute.xlu0 %2137
      %2139 = vrot.lane.b32.xlu0 %v1479, 110
      %v2140 = vpop.permute.xlu0 %2139
      %2141 = vrot.lane.b32.xlu0 %v1480, 110
      %v2142 = vpop.permute.xlu0 %2141
      %2143 = vrot.lane.b32.xlu0 %v1481, 110
      %v2144 = vpop.permute.xlu0 %2143
      %2145 = vrot.lane.b32.xlu0 %v1482, 110
      %v2146 = vpop.permute.xlu0 %2145
      %v2147 = vsel %vm685, %v2124, %v2126
      %v2148 = vsel %vm685, %v2126, %v2128
      %v2149 = vsel %vm685, %v2130, %v2132
      %v2150 = vsel %vm685, %v2132, %v2134
      %v2151 = vsel %vm685, %v2136, %v2138
      %v2152 = vsel %vm685, %v2138, %v2140
      %v2153 = vsel %vm685, %v2142, %v2144
      %v2154 = vsel %vm685, %v2144, %v2146
      %2175 = vrot.lane.b32.xlu0 %v1495, 96
      %v2176 = vpop.permute.xlu0 %2175
      %2177 = vrot.lane.b32.xlu0 %v1496, 96
      %v2178 = vpop.permute.xlu0 %2177
      %2179 = vrot.lane.b32.xlu0 %v1497, 96
      %v2180 = vpop.permute.xlu0 %2179
      %2181 = vrot.lane.b32.xlu0 %v1498, 96
      %v2182 = vpop.permute.xlu0 %2181
      %2183 = vrot.lane.b32.xlu0 %v1499, 96
      %v2184 = vpop.permute.xlu0 %2183
      %2185 = vrot.lane.b32.xlu0 %v1500, 96
      %v2186 = vpop.permute.xlu0 %2185
      %2187 = vrot.lane.b32.xlu0 %v1501, 96
      %v2188 = vpop.permute.xlu0 %2187
      %2189 = vrot.lane.b32.xlu0 %v1502, 96
      %v2190 = vpop.permute.xlu0 %2189
      %2191 = vrot.lane.b32.xlu0 %v1503, 96
      %v2192 = vpop.permute.xlu0 %2191
      %2193 = vrot.lane.b32.xlu0 %v1504, 96
      %v2194 = vpop.permute.xlu0 %2193
      %2195 = vrot.lane.b32.xlu0 %v1505, 96
      %v2196 = vpop.permute.xlu0 %2195
      %2197 = vrot.lane.b32.xlu0 %v1506, 96
      %v2198 = vpop.permute.xlu0 %2197
      %v2199 = vsel %vm699, %v2176, %v2178
      %v2200 = vsel %vm699, %v2178, %v2180
      %v2201 = vsel %vm699, %v2182, %v2184
      %v2202 = vsel %vm699, %v2184, %v2186
      %v2203 = vsel %vm699, %v2188, %v2190
      %v2204 = vsel %vm699, %v2190, %v2192
      %v2205 = vsel %vm699, %v2194, %v2196
      %v2206 = vsel %vm699, %v2196, %v2198
      %2215 = vrot.lane.b32.xlu0 %v1383, 95
      %v2216 = vpop.permute.xlu0 %2215
      %2217 = vrot.lane.b32.xlu0 %v1351, 95
      %v2218 = vpop.permute.xlu0 %2217
      %2219 = vrot.lane.b32.xlu0 %v1391, 95
      %v2220 = vpop.permute.xlu0 %2219
      %2221 = vrot.lane.b32.xlu0 %v1384, 95
      %v2222 = vpop.permute.xlu0 %2221
      %2223 = vrot.lane.b32.xlu0 %v1352, 95
      %v2224 = vpop.permute.xlu0 %2223
      %2225 = vrot.lane.b32.xlu0 %v1392, 95
      %v2226 = vpop.permute.xlu0 %2225
      %2227 = vrot.lane.b32.xlu0 %v1385, 95
      %v2228 = vpop.permute.xlu0 %2227
      %2229 = vrot.lane.b32.xlu0 %v1353, 95
      %v2230 = vpop.permute.xlu0 %2229
      %2231 = vrot.lane.b32.xlu0 %v1393, 95
      %v2232 = vpop.permute.xlu0 %2231
      %2233 = vrot.lane.b32.xlu0 %v1386, 95
      %v2234 = vpop.permute.xlu0 %2233
      %2235 = vrot.lane.b32.xlu0 %v1354, 95
      %v2236 = vpop.permute.xlu0 %2235
      %2237 = vrot.lane.b32.xlu0 %v1394, 95
      %v2238 = vpop.permute.xlu0 %2237
      %v2239 = vsel %vm710, %v2216, %v2218
      %v2240 = vsel %vm710, %v2218, %v2220
      %v2241 = vsel %vm710, %v2222, %v2224
      %v2242 = vsel %vm710, %v2224, %v2226
      %v2243 = vsel %vm710, %v2228, %v2230
      %v2244 = vsel %vm710, %v2230, %v2232
      %v2245 = vsel %vm710, %v2234, %v2236
      %v2246 = vsel %vm710, %v2236, %v2238
      %2267 = vrot.lane.b32.xlu0 %v1519, 94
      %v2268 = vpop.permute.xlu0 %2267
      %2269 = vrot.lane.b32.xlu0 %v1520, 94
      %v2270 = vpop.permute.xlu0 %2269
      %2271 = vrot.lane.b32.xlu0 %v1521, 94
      %v2272 = vpop.permute.xlu0 %2271
      %2273 = vrot.lane.b32.xlu0 %v1522, 94
      %v2274 = vpop.permute.xlu0 %2273
      %2275 = vrot.lane.b32.xlu0 %v1523, 94
      %v2276 = vpop.permute.xlu0 %2275
      %2277 = vrot.lane.b32.xlu0 %v1524, 94
      %v2278 = vpop.permute.xlu0 %2277
      %2279 = vrot.lane.b32.xlu0 %v1525, 94
      %v2280 = vpop.permute.xlu0 %2279
      %2281 = vrot.lane.b32.xlu0 %v1526, 94
      %v2282 = vpop.permute.xlu0 %2281
      %2283 = vrot.lane.b32.xlu0 %v1527, 94
      %v2284 = vpop.permute.xlu0 %2283
      %2285 = vrot.lane.b32.xlu0 %v1528, 94
      %v2286 = vpop.permute.xlu0 %2285
      %2287 = vrot.lane.b32.xlu0 %v1529, 94
      %v2288 = vpop.permute.xlu0 %2287
      %2289 = vrot.lane.b32.xlu0 %v1530, 94
      %v2290 = vpop.permute.xlu0 %2289
      %v2291 = vsel %vm724, %v2268, %v2270
      %v2292 = vsel %vm724, %v2270, %v2272
      %v2293 = vsel %vm724, %v2274, %v2276
      %v2294 = vsel %vm724, %v2276, %v2278
      %v2295 = vsel %vm724, %v2280, %v2282
      %v2296 = vsel %vm724, %v2282, %v2284
      %v2297 = vsel %vm724, %v2286, %v2288
      %v2298 = vsel %vm724, %v2288, %v2290
      %2308 = vset.pattern.permute.xlu0 0
      %2309 = vperm.xlu0 %2308, %v1250
      %v2310 = vpop.permute.xlu0 %2309
      %2313 = vset.pattern.permute.xlu0 0
      %2314 = vperm.xlu0 %2313, %v1251
      %v2315 = vpop.permute.xlu0 %2314
      %2318 = vset.pattern.permute.xlu0 0
      %2319 = vperm.xlu0 %2318, %v1252
      %v2320 = vpop.permute.xlu0 %2319
      %2323 = vset.pattern.permute.xlu0 0
      %2324 = vperm.xlu0 %2323, %v1253
      %v2325 = vpop.permute.xlu0 %2324
      %v2328 = vsel %vm598, %v1240, 0
      %v2331 = vsel %vm598, %v1243, 0
      %v2334 = vsel %vm598, %v1246, 0
      %v2337 = vsel %vm598, %v1249, 0
      %2339 = vmatprep.subr.mxu0 %v2062
      %2340 = vmatpush1.msra.mxu0 %v2061
      %2341 = vmatprep.subr.mxu0 %v2060
      %2342 = vmatpush1.msra.mxu0 %v2059
      %2343 = vmatprep.subr.mxu0 %v2058
      %2344 = vmatpush1.msra.mxu0 %v2057
      %2345 = vmatprep.subr.mxu0 %v2056
      %2346 = vmatpush1.msra.mxu0 %v2055
      %2347 = vmatprep.subr.mxu0 %v2010
      %2348 = vmatpush1.msra.mxu0 %v2009
      %2349 = vmatprep.subr.mxu0 %v2008
      %2350 = vmatpush1.msra.mxu0 %v2007
      %2351 = vmatprep.subr.mxu0 %v2006
      %2352 = vmatpush1.msra.mxu0 %v2005
      %2353 = vmatprep.subr.mxu0 %v2004
      %2354 = vmatpush1.msra.mxu0 %v2003
      %2355 = vmatprep.subr.mxu0 %v1958
      %2356 = vmatpush1.msra.mxu0 %v1957
      %2357 = vmatprep.subr.mxu0 %v1956
      %2358 = vmatpush1.msra.mxu0 %v1955
      %2359 = vmatprep.subr.mxu0 %v1954
      %2360 = vmatpush1.msra.mxu0 %v1953
      %2361 = vmatprep.subr.mxu0 %v1952
      %2362 = vmatpush1.msra.mxu0 %v1951
      %2363 = vmatprep.subr.mxu0 %v1410
      %2364 = vmatpush1.msra.mxu0 %v1409
      %2365 = vmatprep.subr.mxu0 %v1408
      %2366 = vmatpush1.msra.mxu0 %v1407
      %2367 = vmatprep.subr.mxu0 %v1406
      %2368 = vmatpush1.msra.mxu0 %v1405
      %2369 = vmatprep.subr.mxu0 %v1404
      %2370 = vmatpush1.msra.mxu0 %v1403
      %2371 = vmatprep.subr.mxu0 %v2246
      %2372 = vmatpush2.msra.mxu0 %v2245
      %2373 = vmatprep.subr.mxu0 %v2244
      %2374 = vmatpush2.msra.mxu0 %v2243
      %2375 = vmatprep.subr.mxu0 %v2242
      %2376 = vmatpush2.msra.mxu0 %v2241
      %2377 = vmatprep.subr.mxu0 %v2240
      %2378 = vmatpush2.msra.mxu0 %v2239
      %2379 = vmatprep.subr.mxu0 %v2206
      %2380 = vmatpush2.msra.mxu0 %v2205
      %2381 = vmatprep.subr.mxu0 %v2204
      %2382 = vmatpush2.msra.mxu0 %v2203
      %2383 = vmatprep.subr.mxu0 %v2202
      %2384 = vmatpush2.msra.mxu0 %v2201
      %2385 = vmatprep.subr.mxu0 %v2200
      %2386 = vmatpush2.msra.mxu0 %v2199
      %2387 = vmatprep.subr.mxu0 %v2154
      %2388 = vmatpush2.msra.mxu0 %v2153
      %2389 = vmatprep.subr.mxu0 %v2152
      %2390 = vmatpush2.msra.mxu0 %v2151
      %2391 = vmatprep.subr.mxu0 %v2150
      %2392 = vmatpush2.msra.mxu0 %v2149
      %2393 = vmatprep.subr.mxu0 %v2148
      %2394 = vmatpush2.msra.mxu0 %v2147
      %2395 = vmatprep.subr.mxu0 %v2102
      %2396 = vmatpush2.msra.mxu0 %v2101
      %2397 = vmatprep.subr.mxu0 %v2100
      %2398 = vmatpush2.msra.mxu0 %v2099
      %2399 = vmatprep.subr.mxu0 %v2098
      %2400 = vmatpush2.msra.mxu0 %v2097
      %2401 = vmatprep.subr.mxu0 %v2096
      %2402 = vmatpush2.msra.mxu0 %v2095
      %2403 = vmatprep.mubr.f32.mxu0 %v1239
      %2404 = vmatmul.mubr.f32.gmra.mxu0 %v1238
      %v2405 = vpop.f32.mrf.mxu0
      %v2406 = vadd.f32 %v2310, %v2405
      %v2407 = vpop.f32.mrf.mxu0
      %v2408 = vadd.f32 %v2310, %v2407
      %2409 = vmatprep.mubr.f32.mxu0 %v1242
      %2410 = vmatmul.mubr.f32.gmra.mxu0 %v1241
      %v2411 = vpop.f32.mrf.mxu0
      %v2412 = vadd.f32 %v2315, %v2411
      %v2413 = vpop.f32.mrf.mxu0
      %v2414 = vadd.f32 %v2315, %v2413
      %2415 = vmatprep.mubr.f32.mxu0 %v1245
      %2416 = vmatmul.mubr.f32.gmra.mxu0 %v1244
      %v2417 = vpop.f32.mrf.mxu0
      %v2418 = vadd.f32 %v2320, %v2417
      %v2419 = vpop.f32.mrf.mxu0
      %v2420 = vadd.f32 %v2320, %v2419
      %2421 = vmatprep.mubr.f32.mxu0 %v1248
      %2422 = vmatmul.mubr.f32.gmra.mxu0 %v1247
      %v2423 = vpop.f32.mrf.mxu0
      %v2424 = vadd.f32 %v2325, %v2423
      %v2425 = vpop.f32.mrf.mxu0
      %v2426 = vadd.f32 %v2325, %v2425
      %2427 = vdwg.mxu0
      %2428 = vmatprep.subr.mxu0 0.0
      %2429 = vmatpush1.msra.mxu0 0.0
      %2430 = vmatprep.subr.mxu0 0.0
      %2431 = vmatpush1.msra.mxu0 0.0
      %2432 = vmatprep.subr.mxu0 0.0
      %2433 = vmatpush1.msra.mxu0 0.0
      %2434 = vmatprep.subr.mxu0 0.0
      %2435 = vmatpush1.msra.mxu0 0.0
      %2436 = vmatprep.subr.mxu0 0.0
      %2437 = vmatpush1.msra.mxu0 0.0
      %2438 = vmatprep.subr.mxu0 0.0
      %2439 = vmatpush1.msra.mxu0 0.0
      %2440 = vmatprep.subr.mxu0 0.0
      %2441 = vmatpush1.msra.mxu0 0.0
      %2442 = vmatprep.subr.mxu0 0.0
      %2443 = vmatpush1.msra.mxu0 0.0
      %2444 = vmatprep.subr.mxu0 0.0
      %2445 = vmatpush1.msra.mxu0 0.0
      %2446 = vmatprep.subr.mxu0 0.0
      %2447 = vmatpush1.msra.mxu0 0.0
      %2448 = vmatprep.subr.mxu0 0.0
      %2449 = vmatpush1.msra.mxu0 0.0
      %2450 = vmatprep.subr.mxu0 0.0
      %2451 = vmatpush1.msra.mxu0 0.0
      %2452 = vmatprep.subr.mxu0 %v2298
      %2453 = vmatpush1.msra.mxu0 %v2297
      %2454 = vmatprep.subr.mxu0 %v2296
      %2455 = vmatpush1.msra.mxu0 %v2295
      %2456 = vmatprep.subr.mxu0 %v2294
      %2457 = vmatpush1.msra.mxu0 %v2293
      %2458 = vmatprep.subr.mxu0 %v2292
      %2459 = vmatpush1.msra.mxu0 %v2291
      %2460 = vmatprep.subr.mxu0 0.0
      %2461 = vmatpush2.msra.mxu0 0.0
      %2462 = vmatprep.subr.mxu0 0.0
      %2463 = vmatpush2.msra.mxu0 0.0
      %2464 = vmatprep.subr.mxu0 0.0
      %2465 = vmatpush2.msra.mxu0 0.0
      %2466 = vmatprep.subr.mxu0 0.0
      %2467 = vmatpush2.msra.mxu0 0.0
      %2468 = vmatprep.subr.mxu0 0.0
      %2469 = vmatpush2.msra.mxu0 0.0
      %2470 = vmatprep.subr.mxu0 0.0
      %2471 = vmatpush2.msra.mxu0 0.0
      %2472 = vmatprep.subr.mxu0 0.0
      %2473 = vmatpush2.msra.mxu0 0.0
      %2474 = vmatprep.subr.mxu0 0.0
      %2475 = vmatpush2.msra.mxu0 0.0
      %2476 = vmatprep.subr.mxu0 0.0
      %2477 = vmatpush2.msra.mxu0 0.0
      %2478 = vmatprep.subr.mxu0 0.0
      %2479 = vmatpush2.msra.mxu0 0.0
      %2480 = vmatprep.subr.mxu0 0.0
      %2481 = vmatpush2.msra.mxu0 0.0
      %2482 = vmatprep.subr.mxu0 0.0
      %2483 = vmatpush2.msra.mxu0 0.0
      %2484 = vmatprep.subr.mxu0 0.0
      %2485 = vmatpush2.msra.mxu0 0.0
      %2486 = vmatprep.subr.mxu0 0.0
      %2487 = vmatpush2.msra.mxu0 0.0
      %2488 = vmatprep.subr.mxu0 0.0
      %2489 = vmatpush2.msra.mxu0 0.0
      %2490 = vmatprep.subr.mxu0 0.0
      %2491 = vmatpush2.msra.mxu0 0.0
      %2492 = vmatprep.mubr.f32.mxu0 0.0
      %2493 = vmatmul.mubr.f32.gmra.mxu0 %v2328
      %v2494 = vpop.f32.mrf.mxu0
      %v2495 = vadd.f32 %v2406, %v2494
      %v2496 = vpop.f32.mrf.mxu0
      %v2497 = vadd.f32 %v2408, %v2496
      %2498 = vmatprep.mubr.f32.mxu0 0.0
      %2499 = vmatmul.mubr.f32.gmra.mxu0 %v2331
      %v2500 = vpop.f32.mrf.mxu0
      %v2501 = vadd.f32 %v2412, %v2500
      %v2502 = vpop.f32.mrf.mxu0
      %v2503 = vadd.f32 %v2414, %v2502
      %2504 = vmatprep.mubr.f32.mxu0 0.0
      %2505 = vmatmul.mubr.f32.gmra.mxu0 %v2334
      %v2506 = vpop.f32.mrf.mxu0
      %v2507 = vadd.f32 %v2418, %v2506
      %v2508 = vpop.f32.mrf.mxu0
      %v2509 = vadd.f32 %v2420, %v2508
      %2510 = vmatprep.mubr.f32.mxu0 0.0
      %2511 = vmatmul.mubr.f32.gmra.mxu0 %v2337
      %v2512 = vpop.f32.mrf.mxu0
      %v2513 = vadd.f32 %v2424, %v2512
      %v2514 = vpop.f32.mrf.mxu0
      %v2515 = vadd.f32 %v2426, %v2514
      %2516 = vdwg.mxu0
      %2518 = vset.pattern.permute.xlu0 0
      %2519 = vperm.xlu0 %2518, %v1258
      %v2520 = vpop.permute.xlu0 %2519
      %v2524 = vcombine.high %v1256, %v1256
      %v2526 = vsel %vm598, %v1257, 0
      %2528 = vmatprep.subr.mxu0 %v1674
      %2529 = vmatpush1.msra.mxu0 %v1673
      %2530 = vmatprep.subr.mxu0 %v1672
      %2531 = vmatpush1.msra.mxu0 %v1671
      %2532 = vmatprep.subr.mxu0 %v1670
      %2533 = vmatpush1.msra.mxu0 %v1669
      %2534 = vmatprep.subr.mxu0 %v1668
      %2535 = vmatpush1.msra.mxu0 %v1667
      %2536 = vmatprep.subr.mxu0 %v1622
      %2537 = vmatpush1.msra.mxu0 %v1621
      %2538 = vmatprep.subr.mxu0 %v1620
      %2539 = vmatpush1.msra.mxu0 %v1619
      %2540 = vmatprep.subr.mxu0 %v1618
      %2541 = vmatpush1.msra.mxu0 %v1617
      %2542 = vmatprep.subr.mxu0 %v1616
      %2543 = vmatpush1.msra.mxu0 %v1615
      %2544 = vmatprep.subr.mxu0 %v1570
      %2545 = vmatpush1.msra.mxu0 %v1569
      %2546 = vmatprep.subr.mxu0 %v1568
      %2547 = vmatpush1.msra.mxu0 %v1567
      %2548 = vmatprep.subr.mxu0 %v1566
      %2549 = vmatpush1.msra.mxu0 %v1565
      %2550 = vmatprep.subr.mxu0 %v1564
      %2551 = vmatpush1.msra.mxu0 %v1563
      %2552 = vmatprep.subr.mxu0 %v1402
      %2553 = vmatpush1.msra.mxu0 %v1401
      %2554 = vmatprep.subr.mxu0 %v1400
      %2555 = vmatpush1.msra.mxu0 %v1399
      %2556 = vmatprep.subr.mxu0 %v1398
      %2557 = vmatpush1.msra.mxu0 %v1397
      %2558 = vmatprep.subr.mxu0 %v1396
      %2559 = vmatpush1.msra.mxu0 %v1395
      %2560 = vmatprep.subr.mxu0 %v1858
      %2561 = vmatpush2.msra.mxu0 %v1857
      %2562 = vmatprep.subr.mxu0 %v1856
      %2563 = vmatpush2.msra.mxu0 %v1855
      %2564 = vmatprep.subr.mxu0 %v1854
      %2565 = vmatpush2.msra.mxu0 %v1853
      %2566 = vmatprep.subr.mxu0 %v1852
      %2567 = vmatpush2.msra.mxu0 %v1851
      %2568 = vmatprep.subr.mxu0 %v1818
      %2569 = vmatpush2.msra.mxu0 %v1817
      %2570 = vmatprep.subr.mxu0 %v1816
      %2571 = vmatpush2.msra.mxu0 %v1815
      %2572 = vmatprep.subr.mxu0 %v1814
      %2573 = vmatpush2.msra.mxu0 %v1813
      %2574 = vmatprep.subr.mxu0 %v1812
      %2575 = vmatpush2.msra.mxu0 %v1811
      %2576 = vmatprep.subr.mxu0 %v1766
      %2577 = vmatpush2.msra.mxu0 %v1765
      %2578 = vmatprep.subr.mxu0 %v1764
      %2579 = vmatpush2.msra.mxu0 %v1763
      %2580 = vmatprep.subr.mxu0 %v1762
      %2581 = vmatpush2.msra.mxu0 %v1761
      %2582 = vmatprep.subr.mxu0 %v1760
      %2583 = vmatpush2.msra.mxu0 %v1759
      %2584 = vmatprep.subr.mxu0 %v1714
      %2585 = vmatpush2.msra.mxu0 %v1713
      %2586 = vmatprep.subr.mxu0 %v1712
      %2587 = vmatpush2.msra.mxu0 %v1711
      %2588 = vmatprep.subr.mxu0 %v1710
      %2589 = vmatpush2.msra.mxu0 %v1709
      %2590 = vmatprep.subr.mxu0 %v1708
      %2591 = vmatpush2.msra.mxu0 %v1707
      %2592 = vmatprep.mubr.f32.mxu0 %v2524
      %2593 = vmatmul.mubr.f32.gmra.mxu0 %v1256
      %v2594 = vpop.f32.mrf.mxu0
      %v2595 = vadd.f32 %v2520, %v2594
      %v2596 = vpop.f32.mrf.mxu0
      %v2597 = vadd.f32 %v2520, %v2596
      %2598 = vdwg.mxu0
      %2599 = vmatprep.subr.mxu0 0.0
      %2600 = vmatpush1.msra.mxu0 0.0
      %2601 = vmatprep.subr.mxu0 0.0
      %2602 = vmatpush1.msra.mxu0 0.0
      %2603 = vmatprep.subr.mxu0 0.0
      %2604 = vmatpush1.msra.mxu0 0.0
      %2605 = vmatprep.subr.mxu0 0.0
      %2606 = vmatpush1.msra.mxu0 0.0
      %2607 = vmatprep.subr.mxu0 0.0
      %2608 = vmatpush1.msra.mxu0 0.0
      %2609 = vmatprep.subr.mxu0 0.0
      %2610 = vmatpush1.msra.mxu0 0.0
      %2611 = vmatprep.subr.mxu0 0.0
      %2612 = vmatpush1.msra.mxu0 0.0
      %2613 = vmatprep.subr.mxu0 0.0
      %2614 = vmatpush1.msra.mxu0 0.0
      %2615 = vmatprep.subr.mxu0 0.0
      %2616 = vmatpush1.msra.mxu0 0.0
      %2617 = vmatprep.subr.mxu0 0.0
      %2618 = vmatpush1.msra.mxu0 0.0
      %2619 = vmatprep.subr.mxu0 0.0
      %2620 = vmatpush1.msra.mxu0 0.0
      %2621 = vmatprep.subr.mxu0 0.0
      %2622 = vmatpush1.msra.mxu0 0.0
      %2623 = vmatprep.subr.mxu0 %v1910
      %2624 = vmatpush1.msra.mxu0 %v1909
      %2625 = vmatprep.subr.mxu0 %v1908
      %2626 = vmatpush1.msra.mxu0 %v1907
      %2627 = vmatprep.subr.mxu0 %v1906
      %2628 = vmatpush1.msra.mxu0 %v1905
      %2629 = vmatprep.subr.mxu0 %v1904
      %2630 = vmatpush1.msra.mxu0 %v1903
      %2631 = vmatprep.subr.mxu0 0.0
      %2632 = vmatpush2.msra.mxu0 0.0
      %2633 = vmatprep.subr.mxu0 0.0
      %2634 = vmatpush2.msra.mxu0 0.0
      %2635 = vmatprep.subr.mxu0 0.0
      %2636 = vmatpush2.msra.mxu0 0.0
      %2637 = vmatprep.subr.mxu0 0.0
      %2638 = vmatpush2.msra.mxu0 0.0
      %2639 = vmatprep.subr.mxu0 0.0
      %2640 = vmatpush2.msra.mxu0 0.0
      %2641 = vmatprep.subr.mxu0 0.0
      %2642 = vmatpush2.msra.mxu0 0.0
      %2643 = vmatprep.subr.mxu0 0.0
      %2644 = vmatpush2.msra.mxu0 0.0
      %2645 = vmatprep.subr.mxu0 0.0
      %2646 = vmatpush2.msra.mxu0 0.0
      %2647 = vmatprep.subr.mxu0 0.0
      %2648 = vmatpush2.msra.mxu0 0.0
      %2649 = vmatprep.subr.mxu0 0.0
      %2650 = vmatpush2.msra.mxu0 0.0
      %2651 = vmatprep.subr.mxu0 0.0
      %2652 = vmatpush2.msra.mxu0 0.0
      %2653 = vmatprep.subr.mxu0 0.0
      %2654 = vmatpush2.msra.mxu0 0.0
      %2655 = vmatprep.subr.mxu0 0.0
      %2656 = vmatpush2.msra.mxu0 0.0
      %2657 = vmatprep.subr.mxu0 0.0
      %2658 = vmatpush2.msra.mxu0 0.0
      %2659 = vmatprep.subr.mxu0 0.0
      %2660 = vmatpush2.msra.mxu0 0.0
      %2661 = vmatprep.subr.mxu0 0.0
      %2662 = vmatpush2.msra.mxu0 0.0
      %2663 = vmatprep.mubr.f32.mxu0 0.0
      %2664 = vmatmul.mubr.f32.gmra.mxu0 %v2526
      %v2665 = vpop.f32.mrf.mxu0
      %v2666 = vadd.f32 %v2595, %v2665
      %v2667 = vpop.f32.mrf.mxu0
      %v2668 = vadd.f32 %v2597, %v2667
      %2669 = vdwg.mxu0
      %v2670 = vmul.f32 %v2495, 0.5
      %v2671 = vmul.f32 %v2497, 0.5
      %v2672 = vmul.f32 %v2501, 0.5
      %v2673 = vmul.f32 %v2503, 0.5
      %v2674 = vmul.f32 %v2507, 0.5
      %v2675 = vmul.f32 %v2509, 0.5
      %v2676 = vmul.f32 %v2513, 0.5
      %v2677 = vmul.f32 %v2515, 0.5
      %v2678 = vmul.f32 %v2495, 0.70710677
      %v2679 = vmul.f32 %v2497, 0.70710677
      %v2680 = vmul.f32 %v2501, 0.70710677
      %v2681 = vmul.f32 %v2503, 0.70710677
      %v2682 = vmul.f32 %v2507, 0.70710677
      %v2683 = vmul.f32 %v2509, 0.70710677
      %v2684 = vmul.f32 %v2513, 0.70710677
      %v2685 = vmul.f32 %v2515, 0.70710677
      %v2686 = verf.f32.pop %v2678
      %v2687 = verf.f32.pop %v2679
      %v2688 = verf.f32.pop %v2680
      %v2689 = verf.f32.pop %v2681
      %v2690 = verf.f32.pop %v2682
      %v2691 = verf.f32.pop %v2683
      %v2692 = verf.f32.pop %v2684
      %v2693 = verf.f32.pop %v2685
      %v2694 = vadd.f32 %v2686, 1.0
      %v2695 = vadd.f32 %v2687, 1.0
      %v2696 = vadd.f32 %v2688, 1.0
      %v2697 = vadd.f32 %v2689, 1.0
      %v2698 = vadd.f32 %v2690, 1.0
      %v2699 = vadd.f32 %v2691, 1.0
      %v2700 = vadd.f32 %v2692, 1.0
      %v2701 = vadd.f32 %v2693, 1.0
      %v2702 = vmul.f32 %v2670, %v2694
      %v2703 = vmul.f32 %v2671, %v2695
      %v2704 = vmul.f32 %v2672, %v2696
      %v2705 = vmul.f32 %v2673, %v2697
      %v2706 = vmul.f32 %v2674, %v2698
      %v2707 = vmul.f32 %v2675, %v2699
      %v2708 = vmul.f32 %v2676, %v2700
      %v2709 = vmul.f32 %v2677, %v2701
      %2711 = vset.pattern.permute.xlu0 0
      %2712 = vperm.xlu0 %2711, %v1255
      %v2713 = vpop.permute.xlu0 %2712
      %v2716 = vsel %vm598, %v1254, 0
      %2718 = vmatprep.subr.mxu0 0.0
      %2719 = vmatpush1.msra.mxu0 0.0
      %2720 = vmatprep.subr.mxu0 0.0
      %2721 = vmatpush1.msra.mxu0 0.0
      %2722 = vmatprep.subr.mxu0 0.0
      %2723 = vmatpush1.msra.mxu0 0.0
      %2724 = vmatprep.subr.mxu0 0.0
      %2725 = vmatpush1.msra.mxu0 0.0
      %2726 = vmatprep.subr.mxu0 0.0
      %2727 = vmatpush1.msra.mxu0 0.0
      %2728 = vmatprep.subr.mxu0 0.0
      %2729 = vmatpush1.msra.mxu0 0.0
      %2730 = vmatprep.subr.mxu0 0.0
      %2731 = vmatpush1.msra.mxu0 0.0
      %2732 = vmatprep.subr.mxu0 0.0
      %2733 = vmatpush1.msra.mxu0 0.0
      %2734 = vmatprep.subr.mxu0 0.0
      %2735 = vmatpush1.msra.mxu0 0.0
      %2736 = vmatprep.subr.mxu0 0.0
      %2737 = vmatpush1.msra.mxu0 0.0
      %2738 = vmatprep.subr.mxu0 0.0
      %2739 = vmatpush1.msra.mxu0 0.0
      %2740 = vmatprep.subr.mxu0 0.0
      %2741 = vmatpush1.msra.mxu0 0.0
      %2742 = vmatprep.subr.mxu0 %v2709
      %2743 = vmatpush1.msra.mxu0 %v2708
      %2744 = vmatprep.subr.mxu0 %v2707
      %2745 = vmatpush1.msra.mxu0 %v2706
      %2746 = vmatprep.subr.mxu0 %v2705
      %2747 = vmatpush1.msra.mxu0 %v2704
      %2748 = vmatprep.subr.mxu0 %v2703
      %2749 = vmatpush1.msra.mxu0 %v2702
      %2750 = vmatprep.subr.mxu0 0.0
      %2751 = vmatpush2.msra.mxu0 0.0
      %2752 = vmatprep.subr.mxu0 0.0
      %2753 = vmatpush2.msra.mxu0 0.0
      %2754 = vmatprep.subr.mxu0 0.0
      %2755 = vmatpush2.msra.mxu0 0.0
      %2756 = vmatprep.subr.mxu0 0.0
      %2757 = vmatpush2.msra.mxu0 0.0
      %2758 = vmatprep.subr.mxu0 0.0
      %2759 = vmatpush2.msra.mxu0 0.0
      %2760 = vmatprep.subr.mxu0 0.0
      %2761 = vmatpush2.msra.mxu0 0.0
      %2762 = vmatprep.subr.mxu0 0.0
      %2763 = vmatpush2.msra.mxu0 0.0
      %2764 = vmatprep.subr.mxu0 0.0
      %2765 = vmatpush2.msra.mxu0 0.0
      %2766 = vmatprep.subr.mxu0 0.0
      %2767 = vmatpush2.msra.mxu0 0.0
      %2768 = vmatprep.subr.mxu0 0.0
      %2769 = vmatpush2.msra.mxu0 0.0
      %2770 = vmatprep.subr.mxu0 0.0
      %2771 = vmatpush2.msra.mxu0 0.0
      %2772 = vmatprep.subr.mxu0 0.0
      %2773 = vmatpush2.msra.mxu0 0.0
      %2774 = vmatprep.subr.mxu0 0.0
      %2775 = vmatpush2.msra.mxu0 0.0
      %2776 = vmatprep.subr.mxu0 0.0
      %2777 = vmatpush2.msra.mxu0 0.0
      %2778 = vmatprep.subr.mxu0 0.0
      %2779 = vmatpush2.msra.mxu0 0.0
      %2780 = vmatprep.subr.mxu0 0.0
      %2781 = vmatpush2.msra.mxu0 0.0
      %2782 = vmatprep.mubr.f32.mxu0 0.0
      %2783 = vmatmul.mubr.f32.gmra.mxu0 %v2716
      %v2784 = vpop.f32.mrf.mxu0
      %v2785 = vadd.f32 %v2713, %v2784
      %v2786 = vpop.f32.mrf.mxu0
      %v2787 = vadd.f32 %v2713, %v2786
      %2788 = vdwg.mxu0
      %v2789 = vadd.f32 %v2785, %v2666
      %v2790 = vadd.f32 %v2787, %v2668
      %v2793 = vcombine.low %v2789, %v2790
      %2795 = vst [vmem:[%s440] sm:$0x77] %v2793
      %p2796 = scmp.lt.s32.totalorder %s24, 1
      %s2797 = scalar_select %p2796, %s24, 1
      %s2798 = smul.addr %s2797, 2
      %s2799 = smul.addr %s2798, 4
      %s2800 = scalar_lea.vmem %s13, %s2799
      // Predicated region
      $region73: #{spnet_forward.1} parent=71 // pred_check
        %p2801 = pneg %p320
      $region74: #{spnet_forward.1} parent=71 // pred_check_branch
        %2803 = sbr.rel (%p2801) target = $region76
      $region75: #{spnet_forward.1} parent=71 // pred_region
        _
      $region76: #{spnet_forward.1} parent=71 // pred_fallthru
        _
    $region72: #{spnet_forward.1} parent=5 // pred_fallthru
      _
    %p2804 = scmp.le.s32.totalorder 2, %s19
    // Predicated region
    $region77: #{spnet_forward.1} parent=5 // pred_check
      %p2805 = pneg %p2804
    $region78: #{spnet_forward.1} parent=5 // pred_check_branch
      %2807 = sbr.rel (%p2805) target = $region80
    $region79: #{spnet_forward.1} parent=5 // pred_region
      %s2808 = ssub.s32 %s19, 2
      // Predicated region
      $region81: #{spnet_forward.1} parent=79 // pred_check
        %p2809 = pneg %p326
      $region82: #{spnet_forward.1} parent=79 // pred_check_branch
        %2811 = sbr.rel (%p2809) target = $region84
      $region83: #{spnet_forward.1} parent=79 // pred_region
        %p2812 = scmp.lt.s32.totalorder %s25, 1
        %s2813 = scalar_select %p2812, %s25, 1
        %s2814 = smul.addr %s2813, 2
        %s2815 = smul.addr %s2814, 4
        %s2816 = scalar_lea.vmem %s13, %s2815
      $region84: #{spnet_forward.1} parent=79 // pred_fallthru
        _
    $region80: #{spnet_forward.1} parent=5 // pred_fallthru
      _
  $region6: #{spnet_forward.1} parent=0 // loop_footer
    %s23 = sadd.s32 1, %s19
  $region7: #{spnet_forward.1} parent=0 // loop_footer_branch
    %18 = sbr.rel target = $region3
  $region8: #{spnet_forward.1} parent=0 // loop_exit
    _

</llo_original>
